<compile_context>
chip_gen: v7x
topology: tpu7x:2x2x1
jax: 0.10.0
libtpu: 0.0.40
codegen_flags: <defaults>
</compile_context>

<pallas_src>
import functools

import jax
import jax.numpy as jnp
from jax.experimental import pallas as pl
from jax.experimental.pallas import tpu as pltpu

BN_EPS = 1e-5
LANE = 128


def _round_up(x, m):
    return ((x + m - 1) // m) * m


def _pick_sp_tile(hw, max_lanes):
    """Largest multiple-of-128 divisor of hw that is <= max_lanes (else full hw)."""
    if hw <= max_lanes:
        return hw
    best = None
    for t in range(LANE, max_lanes + 1, LANE):
        if hw % t == 0:
            best = t
    return best if best is not None else hw


def _tpu_config():
    """Generation-aware settings: (silu dtype, scoped-VMEM limit, max spatial tile)."""
    try:
        kind = jax.devices()[0].device_kind.lower()
    except Exception:  # pragma: no cover - defensive
        kind = ""
    is_v7 = "v7" in kind
    old_gen = any(g in kind for g in ("v2", "v3", "v4", "v5"))
    # v5e (and older) has no bf16 EUP/VPU -> keep the sigmoid in f32 there;
    # bf16 sigmoid roughly doubles EUP throughput on v6e/v7x.
    silu_dtype = jnp.float32 if old_gen else jnp.bfloat16
    # 128 MiB physical VMEM on v5e/v6e (default scoped limit is much lower);
    # only 64 MiB physical on v7x, so stay conservative there.
    vmem_limit = (40 << 20) if is_v7 else (64 << 20)
    max_sp = 1024 if is_v7 else 2048
    return silu_dtype, vmem_limit, max_sp


def _effnet_kernel(x_ref, w_stem_ref, b_stem_ref, w_fc_ref, b_fc_ref,
                   o_ref, acc_ref, *, inv_hw, silu_dtype):
    t = pl.program_id(1)
    c_in, sp = x_ref.shape
    acc_lanes = acc_ref.shape[1]

    @pl.when(t == 0)
    def _():
        acc_ref[...] = jnp.zeros_like(acc_ref)

    # ---- forward_features stand-in: pointwise conv (stem-BN folded) + SiLU ---
    # C is tiny -> C broadcast multiply-adds on the VPU; layout (F_pad, sp):
    # features on sublanes, spatial on lanes (native NCHW tile orientation).
    x = x_ref[...]                                               # (C, sp) f32
    feat = w_stem_ref[:, 0:1] * x[0:1, :]                        # (F_pad, sp)
    for c in range(1, c_in):                                     # unrolled, C small
        feat = feat + w_stem_ref[:, c:c + 1] * x[c:c + 1, :]
    feat = feat + b_stem_ref[...]                                # (F_pad,1) bcast

    # SiLU: sigmoid on the EUP (bf16 on v6e/v7x, f32 on v5e); multiply in f32.
    sig = jax.nn.sigmoid(feat.astype(silu_dtype)).astype(jnp.float32)
    feat = feat * sig

    # ---- x.mean([2,3]): lane-group partial sums (VPU-only in the hot loop) ---
    part = feat[:, 0:acc_lanes]
    for g in range(1, sp // acc_lanes):                          # unrolled, static
        part = part + feat[:, g * acc_lanes:(g + 1) * acc_lanes]
    acc_ref[...] += part

    # ---- head: BatchNorm1d folded into Linear, + ReLU (last tile only) -------
    @pl.when(t == pl.num_programs(1) - 1)
    def _():
        pooled = jnp.sum(acc_ref[...], axis=1, keepdims=True) * inv_hw  # (F_pad,1)
        # M=1 "matmul" as VPU multiply + one sublane reduce (the MXU would be
        # ~99% idle for M=1); kept in f32 to match the PyTorch head numerics.
        y = jnp.sum(pooled * w_fc_ref[...], axis=0, keepdims=True) + b_fc_ref[...]
        o_ref[...] = jnp.maximum(y, 0.0)


def custom_efficientnet_forward(x_nchw, params, *, sp_tile=None):
    """x_nchw: (N, C, H, W) float32 -> (N, out_features) float32."""
    N, C, H, W = x_nchw.shape
    F = params["w_stem"].shape[1]
    O = params["w_fc"].shape[1]
    HW = H * W
    F_pad = _round_up(F, LANE)
    O_pad = _round_up(O, LANE)

    silu_dtype, vmem_limit, max_sp = _tpu_config()
    if sp_tile is None:
        sp_tile = _pick_sp_tile(HW, max_sp)
    assert HW % sp_tile == 0
    assert sp_tile % LANE == 0 or sp_tile == HW
    n_tiles = HW // sp_tile
    acc_lanes = LANE if sp_tile % LANE == 0 else sp_tile

    # ---- fold affines (trace-time constant folding, zero runtime cost) -------
    w_stem_t = (params["w_stem"] * params["s_stem"]).T                 # (F, C)
    b_stem_c = params["b_stem"].T                                      # (F, 1)
    a = params["bn_gamma"] * jax.lax.rsqrt(params["bn_rv"] + BN_EPS)   # (1, F)
    c = params["bn_beta"] - params["bn_rm"] * a                        # (1, F)
    w_fc = params["w_fc"] * a.reshape(-1, 1)                           # (F, O)
    b_fc = c @ params["w_fc"] + params["b_fc"]                         # (1, O)

    # ---- pad F / O to sublane/lane-dense multiples of 128 ---------------------
    w_stem_t = jnp.pad(w_stem_t, ((0, F_pad - F), (0, 0)))
    b_stem_c = jnp.pad(b_stem_c, ((0, F_pad - F), (0, 0)))
    w_fc = jnp.pad(w_fc, ((0, F_pad - F), (0, O_pad - O)))
    b_fc = jnp.pad(b_fc, ((0, 0), (0, O_pad - O)))

    # ---- NCHW read directly: (N,C,H,W)->(N,C,HW) is a free view reshape ------
    x3d = x_nchw.reshape(N, C, HW)

    cost = pl.CostEstimate(
        flops=N * HW * (2 * C + 6) * F_pad + 3 * N * F_pad * O_pad,
        transcendentals=N * HW * F_pad,
        bytes_accessed=(x3d.size * 4
                        + (w_stem_t.size + b_stem_c.size + w_fc.size + b_fc.size) * 4
                        + N * O_pad * 4),
    )

    def build(single_buffer_weights, silu_dt):
        def const_spec(shape):
            if single_buffer_weights:
                return pl.BlockSpec(shape, lambda n, t: (0, 0),
                                    pipeline_mode=pl.Buffered(1))
            return pl.BlockSpec(shape, lambda n, t: (0, 0))

        kernel = functools.partial(_effnet_kernel, inv_hw=float(1.0 / HW),
                                   silu_dtype=silu_dt)
        return pl.pallas_call(
            kernel,
            out_shape=jax.ShapeDtypeStruct((N, 1, O_pad), jnp.float32),
            grid_spec=pltpu.PrefetchScalarGridSpec(
                num_scalar_prefetch=0,
                grid=(N, n_tiles),
                in_specs=[
                    pl.BlockSpec((None, C, sp_tile), lambda n, t: (n, 0, t)),  # x NCHW tile
                    const_spec((F_pad, C)),       # w_stem^T (stem-BN scale folded)
                    const_spec((F_pad, 1)),       # b_stem column
                    const_spec((F_pad, O_pad)),   # w_fc (head BN folded)
                    const_spec((1, O_pad)),       # b_fc
                ],
                out_specs=pl.BlockSpec((None, 1, O_pad), lambda n, t: (n, 0, 0)),
                scratch_shapes=[pltpu.VMEM((F_pad, acc_lanes), jnp.float32)],
            ),
            compiler_params=pltpu.CompilerParams(
                dimension_semantics=("parallel", "arbitrary"),
                vmem_limit_bytes=vmem_limit,
            ),
            cost_estimate=cost,
        )

    args = (x3d, w_stem_t, b_stem_c, w_fc, b_fc)
    try:
        out = build(True, silu_dtype)(*args)
    except Exception:
        # Conservative fallback: default double-buffered weight specs, f32 SiLU.
        out = build(False, jnp.float32)(*args)

    return out[:, 0, :O]


def reference_forward_f32(x_nchw, params):
    """Pure-f32 JAX reference mirroring the PyTorch module semantics."""
    N, C, H, W = x_nchw.shape
    x = jnp.transpose(x_nchw, (0, 2, 3, 1)).reshape(N, H * W, C)
    feat = x @ params["w_stem"] * params["s_stem"] + params["b_stem"]
    feat = feat * jax.nn.sigmoid(feat)
    pooled = feat.mean(axis=1)                                   # x.mean([2, 3])
    xn = (pooled - params["bn_rm"]) / jnp.sqrt(params["bn_rv"] + BN_EPS)
    xn = xn * params["bn_gamma"] + params["bn_beta"]
    y = xn @ params["w_fc"] + params["b_fc"]
    return jnp.maximum(y, 0.0)


def reference_forward_matched(x_nchw, params, silu_dtype):
    """Reference with the same BN folds + sigmoid dtype as the kernel."""
    N, C, H, W = x_nchw.shape
    x = x_nchw.reshape(N, C, H * W)
    w = params["w_stem"] * params["s_stem"]                      # (C, F)
    feat = jnp.einsum("ncs,cf->nsf", x, w) + params["b_stem"]    # f32
    feat = feat * jax.nn.sigmoid(feat.astype(silu_dtype)).astype(jnp.float32)
    pooled = feat.mean(axis=1)
    a = params["bn_gamma"] * jax.lax.rsqrt(params["bn_rv"] + BN_EPS)
    c = params["bn_beta"] - params["bn_rm"] * a
    y = pooled @ (params["w_fc"] * a.reshape(-1, 1)) + (c @ params["w_fc"] + params["b_fc"])
    return jnp.maximum(y, 0.0)


def init_params(key, c_in, num_features, out_features):
    ks = jax.random.split(key, 8)
    return {
        # "forward_features" stand-in: pointwise conv + folded BN.
        "w_stem": 0.1 * jax.random.normal(ks[0], (c_in, num_features), jnp.float32),
        "s_stem": 1.0 + 0.05 * jax.random.normal(ks[1], (1, num_features), jnp.float32),
        "b_stem": 0.05 * jax.random.normal(ks[2], (1, num_features), jnp.float32),
        # Head BatchNorm1d (eval-mode running stats).
        "bn_gamma": 1.0 + 0.05 * jax.random.normal(ks[3], (1, num_features), jnp.float32),
        "bn_beta": 0.05 * jax.random.normal(ks[4], (1, num_features), jnp.float32),
        "bn_rm": 0.05 * jax.random.normal(ks[5], (1, num_features), jnp.float32),
        "bn_rv": jax.random.uniform(ks[6], (1, num_features), jnp.float32, 0.5, 1.5),
        # Head Linear (PyTorch stores (out, in); we pass the transpose).
        "w_fc": 0.1 * jax.random.normal(ks[7], (num_features, out_features), jnp.float32),
        "b_fc": jnp.zeros((1, out_features), jnp.float32),
    }


if __name__ == "__main__":
    N, C_IN, H, W = 2, 4, 16, 16        # small NCHW input like PyTorch
    NUM_FEATURES = 32                   # base_model.classifier.in_features
    OUT_FEATURES = 8                    # base_model.classifier.out_features

    key = jax.random.PRNGKey(0)
    k_x, k_p = jax.random.split(key)
    x = jax.random.normal(k_x, (N, C_IN, H, W), jnp.float32)
    params = init_params(k_p, C_IN, NUM_FEATURES, OUT_FEATURES)

    # sp_tile=128 -> 2 spatial tiles per batch, exercising the pooled reduction
    # across grid steps (the auto-picked tile would be the full 256 lanes here).
    out = custom_efficientnet_forward(x, params, sp_tile=128)
    out = jax.block_until_ready(out)
    assert out.shape == (N, OUT_FEATURES)

    silu_dtype, _, _ = _tpu_config()
    ref_m = reference_forward_matched(x, params, silu_dtype)   # numerics-matched
    ref_f32 = reference_forward_f32(x, params)                 # module semantics
    assert jnp.allclose(out, ref_m, atol=1e-2, rtol=5e-2), "mismatch vs matched reference"
    assert jnp.allclose(out, ref_f32, atol=3e-2, rtol=1e-1), "mismatch vs f32 reference"

    print("KERNEL_OK")
</pallas_src>

<mosaic_0001>
module attributes {stable_mosaic.version = 11 : i64} {
  func.func @_effnet_kernel(%arg0: i32, %arg1: i32, %arg2: memref<1x4x128xf32, #tpu.memory_space<vmem>>, %arg3: memref<128x4xf32, #tpu.memory_space<vmem>>, %arg4: memref<128x1xf32, #tpu.memory_space<vmem>>, %arg5: memref<128x128xf32, #tpu.memory_space<vmem>>, %arg6: memref<1x128xf32, #tpu.memory_space<vmem>>, %arg7: memref<1x1x128xf32, #tpu.memory_space<vmem>>, %arg8: memref<128x128xf32, #tpu.memory_space<vmem>>) attributes {dimension_semantics = [#tpu.dimension_semantics<parallel>, #tpu.dimension_semantics<arbitrary>], iteration_bounds = array<i64: 2, 2>, scalar_prefetch = 0 : i64, scratch_operands = 1 : i64, tpu.core_type = #tpu.core_type<tc>, window_params = [{transform_indices = @transform_0, window_bounds = array<i64: 1, 4, 128>}, {pipeline_mode = #tpu.pipeline_mode<synchronous>, transform_indices = @transform_1, window_bounds = array<i64: 128, 4>}, {pipeline_mode = #tpu.pipeline_mode<synchronous>, transform_indices = @transform_2, window_bounds = array<i64: 128, 1>}, {pipeline_mode = #tpu.pipeline_mode<synchronous>, transform_indices = @transform_3, window_bounds = array<i64: 128, 128>}, {pipeline_mode = #tpu.pipeline_mode<synchronous>, transform_indices = @transform_4, window_bounds = array<i64: 1, 128>}, {transform_indices = @transform_5, window_bounds = array<i64: 1, 1, 128>}]} {
    %c0_i32 = arith.constant 0 : i32
    %0 = arith.cmpi eq, %arg1, %c0_i32 : i32
    %1 = arith.extui %0 : i1 to i32
    %c0_i32_0 = arith.constant 0 : i32
    %2 = arith.cmpi ne, %1, %c0_i32_0 : i32
    scf.if %2 {
      %cst_15 = arith.constant 0.000000e+00 : f32
      %45 = vector.broadcast %cst_15 : f32 to vector<128x128xf32>
      %c0_16 = arith.constant 0 : index
      %c0_17 = arith.constant 0 : index
      %46 = vector.load %arg8[%c0_16, %c0_17] : memref<128x128xf32, #tpu.memory_space<vmem>>, vector<128x128xf32>
      tpu.vector_store %arg8[%c0_16, %c0_17], %45 {strides = array<i32>} : memref<128x128xf32, #tpu.memory_space<vmem>>, vector<128x128xf32>,
    } else {
    }
    %c0 = arith.constant 0 : index
    %c0_1 = arith.constant 0 : index
    %c0_2 = arith.constant 0 : index
    %3 = vector.load %arg2[%c0, %c0_1, %c0_2] : memref<1x4x128xf32, #tpu.memory_space<vmem>>, vector<1x4x128xf32>
    %4 = vector.shape_cast %3 : vector<1x4x128xf32> to vector<4x128xf32>
    %c0_3 = arith.constant 0 : index
    %c0_4 = arith.constant 0 : index
    %5 = vector.load %arg3[%c0_3, %c0_4] : memref<128x4xf32, #tpu.memory_space<vmem>>, vector<128x1xf32>
    %6 = vector.extract_strided_slice %4 {offsets = [0, 0], sizes = [1, 128], strides = [1, 1]} : vector<4x128xf32> to vector<1x128xf32>
    %7 = vector.broadcast %5 : vector<128x1xf32> to vector<128x128xf32>
    %8 = vector.broadcast %6 : vector<1x128xf32> to vector<128x128xf32>
    %9 = arith.mulf %7, %8 : vector<128x128xf32>
    %c0_5 = arith.constant 0 : index
    %c1 = arith.constant 1 : index
    %10 = vector.load %arg3[%c0_5, %c1] : memref<128x4xf32, #tpu.memory_space<vmem>>, vector<128x1xf32>
    %11 = vector.extract_strided_slice %4 {offsets = [1, 0], sizes = [1, 128], strides = [1, 1]} : vector<4x128xf32> to vector<1x128xf32>
    %12 = vector.broadcast %10 : vector<128x1xf32> to vector<128x128xf32>
    %13 = vector.broadcast %11 : vector<1x128xf32> to vector<128x128xf32>
    %14 = arith.mulf %12, %13 : vector<128x128xf32>
    %15 = arith.addf %9, %14 : vector<128x128xf32>
    %c0_6 = arith.constant 0 : index
    %c2 = arith.constant 2 : index
    %16 = vector.load %arg3[%c0_6, %c2] : memref<128x4xf32, #tpu.memory_space<vmem>>, vector<128x1xf32>
    %17 = vector.extract_strided_slice %4 {offsets = [2, 0], sizes = [1, 128], strides = [1, 1]} : vector<4x128xf32> to vector<1x128xf32>
    %18 = vector.broadcast %16 : vector<128x1xf32> to vector<128x128xf32>
    %19 = vector.broadcast %17 : vector<1x128xf32> to vector<128x128xf32>
    %20 = arith.mulf %18, %19 : vector<128x128xf32>
    %21 = arith.addf %15, %20 : vector<128x128xf32>
    %c0_7 = arith.constant 0 : index
    %c3 = arith.constant 3 : index
    %22 = vector.load %arg3[%c0_7, %c3] : memref<128x4xf32, #tpu.memory_space<vmem>>, vector<128x1xf32>
    %23 = vector.extract_strided_slice %4 {offsets = [3, 0], sizes = [1, 128], strides = [1, 1]} : vector<4x128xf32> to vector<1x128xf32>
    %24 = vector.broadcast %22 : vector<128x1xf32> to vector<128x128xf32>
    %25 = vector.broadcast %23 : vector<1x128xf32> to vector<128x128xf32>
    %26 = arith.mulf %24, %25 : vector<128x128xf32>
    %27 = arith.addf %21, %26 : vector<128x128xf32>
    %c0_8 = arith.constant 0 : index
    %c0_9 = arith.constant 0 : index
    %28 = vector.load %arg4[%c0_8, %c0_9] : memref<128x1xf32, #tpu.memory_space<vmem>>, vector<128x1xf32>
    %29 = vector.broadcast %28 : vector<128x1xf32> to vector<128x128xf32>
    %30 = arith.addf %27, %29 : vector<128x128xf32>
    %31 = arith.truncf %30 : vector<128x128xf32> to vector<128x128xbf16>
    %32 = arith.negf %31 : vector<128x128xbf16>
    %33 = math.exp %32 : vector<128x128xbf16>
    %cst = arith.constant 1.000000e+00 : bf16
    %34 = vector.broadcast %cst : bf16 to vector<128x128xbf16>
    %35 = arith.addf %34, %33 : vector<128x128xbf16>
    %36 = arith.divf %34, %35 : vector<128x128xbf16>
    %37 = arith.extf %36 : vector<128x128xbf16> to vector<128x128xf32>
    %38 = arith.mulf %30, %37 : vector<128x128xf32>
    %c0_10 = arith.constant 0 : index
    %c0_11 = arith.constant 0 : index
    %39 = vector.load %arg8[%c0_10, %c0_11] : memref<128x128xf32, #tpu.memory_space<vmem>>, vector<128x128xf32>
    %40 = arith.addf %39, %38 : vector<128x128xf32>
    %c0_12 = arith.constant 0 : index
    %c0_13 = arith.constant 0 : index
    %41 = vector.load %arg8[%c0_12, %c0_13] : memref<128x128xf32, #tpu.memory_space<vmem>>, vector<128x128xf32>
    tpu.vector_store %arg8[%c0_12, %c0_13], %40 {strides = array<i32>} : memref<128x128xf32, #tpu.memory_space<vmem>>, vector<128x128xf32>,
    %c1_i32 = arith.constant 1 : i32
    %42 = arith.cmpi eq, %arg1, %c1_i32 : i32
    %43 = arith.extui %42 : i1 to i32
    %c0_i32_14 = arith.constant 0 : i32
    %44 = arith.cmpi ne, %43, %c0_i32_14 : i32
    scf.if %44 {
      %c0_15 = arith.constant 0 : index
      %c0_16 = arith.constant 0 : index
      %45 = vector.load %arg8[%c0_15, %c0_16] : memref<128x128xf32, #tpu.memory_space<vmem>>, vector<128x128xf32>
      %cst_17 = arith.constant dense<0.000000e+00> : vector<128xf32>
      %46 = vector.multi_reduction <add>, %45, %cst_17 [1] : vector<128x128xf32> to vector<128xf32>
      %47 = vector.shape_cast %46 : vector<128xf32> to vector<128x1xf32>
      %cst_18 = arith.constant 3.906250e-03 : f32
      %48 = vector.broadcast %cst_18 : f32 to vector<128x1xf32>
      %49 = arith.mulf %47, %48 : vector<128x1xf32>
      %c0_19 = arith.constant 0 : index
      %c0_20 = arith.constant 0 : index
      %50 = vector.load %arg5[%c0_19, %c0_20] : memref<128x128xf32, #tpu.memory_space<vmem>>, vector<128x128xf32>
      %51 = vector.broadcast %49 : vector<128x1xf32> to vector<128x128xf32>
      %52 = arith.mulf %51, %50 : vector<128x128xf32>
      %cst_21 = arith.constant dense<0.000000e+00> : vector<128xf32>
      %53 = vector.multi_reduction <add>, %52, %cst_21 [0] : vector<128x128xf32> to vector<128xf32>
      %54 = vector.shape_cast %53 : vector<128xf32> to vector<1x128xf32>
      %c0_22 = arith.constant 0 : index
      %c0_23 = arith.constant 0 : index
      %55 = vector.load %arg6[%c0_22, %c0_23] : memref<1x128xf32, #tpu.memory_space<vmem>>, vector<1x128xf32>
      %56 = arith.addf %54, %55 : vector<1x128xf32>
      %cst_24 = arith.constant 0.000000e+00 : f32
      %57 = vector.broadcast %cst_24 : f32 to vector<1x128xf32>
      %58 = arith.maximumf %56, %57 : vector<1x128xf32>
      %c0_25 = arith.constant 0 : index
      %c0_26 = arith.constant 0 : index
      %c0_27 = arith.constant 0 : index
      %59 = vector.load %arg7[%c0_25, %c0_26, %c0_27] : memref<1x1x128xf32, #tpu.memory_space<vmem>>, vector<1x1x128xf32>
      %60 = vector.shape_cast %59 : vector<1x1x128xf32> to vector<1x128xf32>
      %61 = vector.shape_cast %58 : vector<1x128xf32> to vector<1x1x128xf32>
      tpu.vector_store %arg7[%c0_25, %c0_26, %c0_27], %61 {strides = array<i32>} : memref<1x1x128xf32, #tpu.memory_space<vmem>>, vector<1x1x128xf32>,
    } else {
    }
    return
  }
  func.func @transform_0(%arg0: i32, %arg1: i32) -> (i32, i32, i32) {
    %c0_i32 = arith.constant 0 : i32
    %c0_i32_0 = arith.constant 0 : i32
    return %arg0, %c0_i32, %arg1 : i32, i32, i32
  }
  func.func @transform_1(%arg0: i32, %arg1: i32) -> (i32, i32) {
    %c0_i32 = arith.constant 0 : i32
    %c0_i32_0 = arith.constant 0 : i32
    %c0_i32_1 = arith.constant 0 : i32
    return %c0_i32, %c0_i32_0 : i32, i32
  }
  func.func @transform_2(%arg0: i32, %arg1: i32) -> (i32, i32) {
    %c0_i32 = arith.constant 0 : i32
    %c0_i32_0 = arith.constant 0 : i32
    %c0_i32_1 = arith.constant 0 : i32
    return %c0_i32, %c0_i32_0 : i32, i32
  }
  func.func @transform_3(%arg0: i32, %arg1: i32) -> (i32, i32) {
    %c0_i32 = arith.constant 0 : i32
    %c0_i32_0 = arith.constant 0 : i32
    %c0_i32_1 = arith.constant 0 : i32
    return %c0_i32, %c0_i32_0 : i32, i32
  }
  func.func @transform_4(%arg0: i32, %arg1: i32) -> (i32, i32) {
    %c0_i32 = arith.constant 0 : i32
    %c0_i32_0 = arith.constant 0 : i32
    %c0_i32_1 = arith.constant 0 : i32
    return %c0_i32, %c0_i32_0 : i32, i32
  }
  func.func @transform_5(%arg0: i32, %arg1: i32) -> (i32, i32, i32) {
    %c0_i32 = arith.constant 0 : i32
    %c0_i32_0 = arith.constant 0 : i32
    %c0_i32_1 = arith.constant 0 : i32
    return %arg0, %c0_i32, %c0_i32_0 : i32, i32, i32
  }
}

module attributes {stable_mosaic.version = 11 : i64} {
  func.func @_effnet_kernel(%arg0: i32, %arg1: i32, %arg2: memref<1x4x128xf32, #tpu.memory_space<vmem>>, %arg3: memref<128x4xf32, #tpu.memory_space<vmem>>, %arg4: memref<128x1xf32, #tpu.memory_space<vmem>>, %arg5: memref<128x128xf32, #tpu.memory_space<vmem>>, %arg6: memref<1x128xf32, #tpu.memory_space<vmem>>, %arg7: memref<1x1x128xf32, #tpu.memory_space<vmem>>, %arg8: memref<128x128xf32, #tpu.memory_space<vmem>>) attributes {dimension_semantics = [#tpu.dimension_semantics<parallel>, #tpu.dimension_semantics<arbitrary>], iteration_bounds = array<i64: 2, 2>, scalar_prefetch = 0 : i64, scratch_operands = 1 : i64, tpu.core_type = #tpu.core_type<tc>, window_params = [{transform_indices = @transform_0, window_bounds = array<i64: 1, 4, 128>}, {pipeline_mode = #tpu.pipeline_mode<synchronous>, transform_indices = @transform_1, window_bounds = array<i64: 128, 4>}, {pipeline_mode = #tpu.pipeline_mode<synchronous>, transform_indices = @transform_2, window_bounds = array<i64: 128, 1>}, {pipeline_mode = #tpu.pipeline_mode<synchronous>, transform_indices = @transform_3, window_bounds = array<i64: 128, 128>}, {pipeline_mode = #tpu.pipeline_mode<synchronous>, transform_indices = @transform_4, window_bounds = array<i64: 1, 128>}, {transform_indices = @transform_5, window_bounds = array<i64: 1, 1, 128>}]} {
    %c0_i32 = arith.constant 0 : i32
    %0 = arith.cmpi eq, %arg1, %c0_i32 : i32
    %1 = arith.extui %0 : i1 to i32
    %c0_i32_0 = arith.constant 0 : i32
    %2 = arith.cmpi ne, %1, %c0_i32_0 : i32
    scf.if %2 {
      %cst_15 = arith.constant 0.000000e+00 : f32
      %43 = vector.broadcast %cst_15 : f32 to vector<128x128xf32>
      %c0_16 = arith.constant 0 : index
      %c0_17 = arith.constant 0 : index
      %44 = vector.load %arg8[%c0_16, %c0_17] : memref<128x128xf32, #tpu.memory_space<vmem>>, vector<128x128xf32>
      tpu.vector_store %arg8[%c0_16, %c0_17], %43 {strides = array<i32>} : memref<128x128xf32, #tpu.memory_space<vmem>>, vector<128x128xf32>,
    } else {
    }
    %c0 = arith.constant 0 : index
    %c0_1 = arith.constant 0 : index
    %c0_2 = arith.constant 0 : index
    %3 = vector.load %arg2[%c0, %c0_1, %c0_2] : memref<1x4x128xf32, #tpu.memory_space<vmem>>, vector<1x4x128xf32>
    %4 = vector.shape_cast %3 : vector<1x4x128xf32> to vector<4x128xf32>
    %c0_3 = arith.constant 0 : index
    %c0_4 = arith.constant 0 : index
    %5 = vector.load %arg3[%c0_3, %c0_4] : memref<128x4xf32, #tpu.memory_space<vmem>>, vector<128x1xf32>
    %6 = vector.extract_strided_slice %4 {offsets = [0, 0], sizes = [1, 128], strides = [1, 1]} : vector<4x128xf32> to vector<1x128xf32>
    %7 = vector.broadcast %5 : vector<128x1xf32> to vector<128x128xf32>
    %8 = vector.broadcast %6 : vector<1x128xf32> to vector<128x128xf32>
    %9 = arith.mulf %7, %8 : vector<128x128xf32>
    %c0_5 = arith.constant 0 : index
    %c1 = arith.constant 1 : index
    %10 = vector.load %arg3[%c0_5, %c1] : memref<128x4xf32, #tpu.memory_space<vmem>>, vector<128x1xf32>
    %11 = vector.extract_strided_slice %4 {offsets = [1, 0], sizes = [1, 128], strides = [1, 1]} : vector<4x128xf32> to vector<1x128xf32>
    %12 = vector.broadcast %10 : vector<128x1xf32> to vector<128x128xf32>
    %13 = vector.broadcast %11 : vector<1x128xf32> to vector<128x128xf32>
    %14 = arith.mulf %12, %13 : vector<128x128xf32>
    %15 = arith.addf %9, %14 : vector<128x128xf32>
    %c0_6 = arith.constant 0 : index
    %c2 = arith.constant 2 : index
    %16 = vector.load %arg3[%c0_6, %c2] : memref<128x4xf32, #tpu.memory_space<vmem>>, vector<128x1xf32>
    %17 = vector.extract_strided_slice %4 {offsets = [2, 0], sizes = [1, 128], strides = [1, 1]} : vector<4x128xf32> to vector<1x128xf32>
    %18 = vector.broadcast %16 : vector<128x1xf32> to vector<128x128xf32>
    %19 = vector.broadcast %17 : vector<1x128xf32> to vector<128x128xf32>
    %20 = arith.mulf %18, %19 : vector<128x128xf32>
    %21 = arith.addf %15, %20 : vector<128x128xf32>
    %c0_7 = arith.constant 0 : index
    %c3 = arith.constant 3 : index
    %22 = vector.load %arg3[%c0_7, %c3] : memref<128x4xf32, #tpu.memory_space<vmem>>, vector<128x1xf32>
    %23 = vector.extract_strided_slice %4 {offsets = [3, 0], sizes = [1, 128], strides = [1, 1]} : vector<4x128xf32> to vector<1x128xf32>
    %24 = vector.broadcast %22 : vector<128x1xf32> to vector<128x128xf32>
    %25 = vector.broadcast %23 : vector<1x128xf32> to vector<128x128xf32>
    %26 = arith.mulf %24, %25 : vector<128x128xf32>
    %27 = arith.addf %21, %26 : vector<128x128xf32>
    %c0_8 = arith.constant 0 : index
    %c0_9 = arith.constant 0 : index
    %28 = vector.load %arg4[%c0_8, %c0_9] : memref<128x1xf32, #tpu.memory_space<vmem>>, vector<128x1xf32>
    %29 = vector.broadcast %28 : vector<128x1xf32> to vector<128x128xf32>
    %30 = arith.addf %27, %29 : vector<128x128xf32>
    %31 = arith.negf %30 : vector<128x128xf32>
    %32 = math.exp %31 : vector<128x128xf32>
    %cst = arith.constant 1.000000e+00 : f32
    %33 = vector.broadcast %cst : f32 to vector<128x128xf32>
    %34 = arith.addf %33, %32 : vector<128x128xf32>
    %35 = arith.divf %33, %34 : vector<128x128xf32>
    %36 = arith.mulf %30, %35 : vector<128x128xf32>
    %c0_10 = arith.constant 0 : index
    %c0_11 = arith.constant 0 : index
    %37 = vector.load %arg8[%c0_10, %c0_11] : memref<128x128xf32, #tpu.memory_space<vmem>>, vector<128x128xf32>
    %38 = arith.addf %37, %36 : vector<128x128xf32>
    %c0_12 = arith.constant 0 : index
    %c0_13 = arith.constant 0 : index
    %39 = vector.load %arg8[%c0_12, %c0_13] : memref<128x128xf32, #tpu.memory_space<vmem>>, vector<128x128xf32>
    tpu.vector_store %arg8[%c0_12, %c0_13], %38 {strides = array<i32>} : memref<128x128xf32, #tpu.memory_space<vmem>>, vector<128x128xf32>,
    %c1_i32 = arith.constant 1 : i32
    %40 = arith.cmpi eq, %arg1, %c1_i32 : i32
    %41 = arith.extui %40 : i1 to i32
    %c0_i32_14 = arith.constant 0 : i32
    %42 = arith.cmpi ne, %41, %c0_i32_14 : i32
    scf.if %42 {
      %c0_15 = arith.constant 0 : index
      %c0_16 = arith.constant 0 : index
      %43 = vector.load %arg8[%c0_15, %c0_16] : memref<128x128xf32, #tpu.memory_space<vmem>>, vector<128x128xf32>
      %cst_17 = arith.constant dense<0.000000e+00> : vector<128xf32>
      %44 = vector.multi_reduction <add>, %43, %cst_17 [1] : vector<128x128xf32> to vector<128xf32>
      %45 = vector.shape_cast %44 : vector<128xf32> to vector<128x1xf32>
      %cst_18 = arith.constant 3.906250e-03 : f32
      %46 = vector.broadcast %cst_18 : f32 to vector<128x1xf32>
      %47 = arith.mulf %45, %46 : vector<128x1xf32>
      %c0_19 = arith.constant 0 : index
      %c0_20 = arith.constant 0 : index
      %48 = vector.load %arg5[%c0_19, %c0_20] : memref<128x128xf32, #tpu.memory_space<vmem>>, vector<128x128xf32>
      %49 = vector.broadcast %47 : vector<128x1xf32> to vector<128x128xf32>
      %50 = arith.mulf %49, %48 : vector<128x128xf32>
      %cst_21 = arith.constant dense<0.000000e+00> : vector<128xf32>
      %51 = vector.multi_reduction <add>, %50, %cst_21 [0] : vector<128x128xf32> to vector<128xf32>
      %52 = vector.shape_cast %51 : vector<128xf32> to vector<1x128xf32>
      %c0_22 = arith.constant 0 : index
      %c0_23 = arith.constant 0 : index
      %53 = vector.load %arg6[%c0_22, %c0_23] : memref<1x128xf32, #tpu.memory_space<vmem>>, vector<1x128xf32>
      %54 = arith.addf %52, %53 : vector<1x128xf32>
      %cst_24 = arith.constant 0.000000e+00 : f32
      %55 = vector.broadcast %cst_24 : f32 to vector<1x128xf32>
      %56 = arith.maximumf %54, %55 : vector<1x128xf32>
      %c0_25 = arith.constant 0 : index
      %c0_26 = arith.constant 0 : index
      %c0_27 = arith.constant 0 : index
      %57 = vector.load %arg7[%c0_25, %c0_26, %c0_27] : memref<1x1x128xf32, #tpu.memory_space<vmem>>, vector<1x1x128xf32>
      %58 = vector.shape_cast %57 : vector<1x1x128xf32> to vector<1x128xf32>
      %59 = vector.shape_cast %56 : vector<1x128xf32> to vector<1x1x128xf32>
      tpu.vector_store %arg7[%c0_25, %c0_26, %c0_27], %59 {strides = array<i32>} : memref<1x1x128xf32, #tpu.memory_space<vmem>>, vector<1x1x128xf32>,
    } else {
    }
    return
  }
  func.func @transform_0(%arg0: i32, %arg1: i32) -> (i32, i32, i32) {
    %c0_i32 = arith.constant 0 : i32
    %c0_i32_0 = arith.constant 0 : i32
    return %arg0, %c0_i32, %arg1 : i32, i32, i32
  }
  func.func @transform_1(%arg0: i32, %arg1: i32) -> (i32, i32) {
    %c0_i32 = arith.constant 0 : i32
    %c0_i32_0 = arith.constant 0 : i32
    %c0_i32_1 = arith.constant 0 : i32
    return %c0_i32, %c0_i32_0 : i32, i32
  }
  func.func @transform_2(%arg0: i32, %arg1: i32) -> (i32, i32) {
    %c0_i32 = arith.constant 0 : i32
    %c0_i32_0 = arith.constant 0 : i32
    %c0_i32_1 = arith.constant 0 : i32
    return %c0_i32, %c0_i32_0 : i32, i32
  }
  func.func @transform_3(%arg0: i32, %arg1: i32) -> (i32, i32) {
    %c0_i32 = arith.constant 0 : i32
    %c0_i32_0 = arith.constant 0 : i32
    %c0_i32_1 = arith.constant 0 : i32
    return %c0_i32, %c0_i32_0 : i32, i32
  }
  func.func @transform_4(%arg0: i32, %arg1: i32) -> (i32, i32) {
    %c0_i32 = arith.constant 0 : i32
    %c0_i32_0 = arith.constant 0 : i32
    %c0_i32_1 = arith.constant 0 : i32
    return %c0_i32, %c0_i32_0 : i32, i32
  }
  func.func @transform_5(%arg0: i32, %arg1: i32) -> (i32, i32, i32) {
    %c0_i32 = arith.constant 0 : i32
    %c0_i32_0 = arith.constant 0 : i32
    %c0_i32_1 = arith.constant 0 : i32
    return %arg0, %c0_i32, %c0_i32_0 : i32, i32, i32
  }
}

</mosaic_0001>

<llo_original>
// kernel: tpu_custom_call.1
$region0: #{tpu_custom_call.1}
  #allocation0 [shape = 'u32[]', space=smem, size = 0x4, offset = 0x4, fixed_abs, tag = 'smem constant byte address 0x4 - core index']
  #allocation1 [shape = 'u32[144,128]{1,0:T(1,128)}', space=vmem, size = 0x12000, scoped, tag = 'internal scratch']
  #allocation2 [shape = 'f32[128,128]{1,0:T(8,128)}', space=vmem, size = 0x10000, scoped, tag = 'scratch operand']
  %s0 = inlined_call_operand.hbm [shape: f32[2,4,256], index: 0, kind: input, shape index: {}]
  %s1 = inlined_call_operand.hbm [shape: f32[128,4], index: 1, kind: input, shape index: {}]
  %s2 = inlined_call_operand.hbm [shape: f32[128,1], index: 2, kind: input, shape index: {}]
  %s3 = inlined_call_operand.hbm [shape: f32[128,128], index: 3, kind: input, shape index: {}]
  %s4 = inlined_call_operand.hbm [shape: f32[1,128], index: 4, kind: input, shape index: {}]
  %s5 = inlined_call_operand.hbm [shape: f32[2,1,128], index: 5, kind: output, shape index: {}]
  %s6 = sld [smem:[#allocation0]]
  $region81: #{tpu_custom_call.1} parent=0
    _
  %s8 = ssub.s32 1, %s6
  %s9 = scalar_select 0, %s8, %s6
  $region1: #{tpu_custom_call.1} parent=0
    #allocation3 [shape = 'u8[4096]{0}', space=vmem, size = 0x1000, scoped, tag = 'input window, operand 0']
    #allocation4 [shape = 's32[2]{0}', space=sflag, size = 0x8, scoped, tag = 'scoped memory for tpu_custom_call.1']
    #allocation5 [shape = 's32[2]{0}', space=sflag, size = 0x8, scoped, tag = 'scoped memory for tpu_custom_call.1']
    #allocation6 [shape = 'u8[65536]{0}', space=vmem, size = 0x10000, scoped, tag = 'input window, operand 1, single buffered']
    #allocation7 [shape = 's32[1]{0}', space=sflag, size = 0x4, scoped, tag = 'scoped memory for tpu_custom_call.1']
    #allocation8 [shape = 'u8[65536]{0}', space=vmem, size = 0x10000, scoped, tag = 'input window, operand 2, single buffered']
    #allocation9 [shape = 'u8[65536]{0}', space=vmem, size = 0x10000, scoped, tag = 'input window, operand 3, single buffered']
    #allocation10 [shape = 's32[1]{0}', space=sflag, size = 0x4, scoped, tag = 'scoped memory for tpu_custom_call.1']
    #allocation11 [shape = 'u8[512]{0}', space=vmem, size = 0x400, scoped, tag = 'input window, operand 4, single buffered']
    #allocation12 [shape = 'u8[1024]{0}', space=vmem, size = 0x400, scoped, tag = 'output window, operand 0']
    %10 = vsyncpa [#allocation4], 0
    %s11 = scalar_lea.sflag [#allocation4], 1
    %12 = vsyncpa %s11, 0
    %13 = vsyncpa [#allocation7], 0
    %14 = vsyncpa [#allocation10], 0
    %15 = vsyncpa [#allocation5], 0
    %s16 = scalar_lea.sflag [#allocation5], 1
    %17 = vsyncpa %s16, 0
    loop: start=0, step=1, limit=6
    $region2: #{tpu_custom_call.1} parent=1 // loop_pre_header
      _
    $region3: #{tpu_custom_call.1} parent=1 // loop_header
      %s19 = sphi 0, %s23
      %p20 = scmp.ge.s32.totalorder %s19, 6
      %s26 = sphi 0, %s38
      %s27 = sphi 0, %s34
      %s28 = sphi 0, %s26
      %s29 = sphi 0, %s27
      %s30 = sphi 0, %s28
      %s31 = sphi 0, %s29
      %s43 = sphi 0, %s45
      %s46 = sphi 0, %s43
      %s47 = sphi 0, %s46
      %s63 = sphi 0, %s47
      %s67 = sphi 0, %s67
      %s69 = sphi 0, %s67
      %s70 = sphi 0, %s69
      %s84 = sphi 0, %s70
      %s88 = sphi 0, %s88
      %s90 = sphi 0, %s88
      %s91 = sphi 0, %s90
      %s105 = sphi 0, %s91
      %s109 = sphi 0, %s109
      %s111 = sphi 0, %s109
      %s112 = sphi 0, %s111
      %s126 = sphi 0, %s112
      %s130 = sphi 0, %s130
      %s132 = sphi 0, %s130
      %s133 = sphi 0, %s132
      %s147 = sphi 0, %s133
      %s153 = sphi 0, %s155
      %s156 = sphi 0, %s153
      %s157 = sphi 0, %s156
      %s173 = sphi 0, %s157
    $region4: #{tpu_custom_call.1} parent=1 // loop_header_branch
      %22 = sbr.rel (%p20) target = $region8
    $region5: #{tpu_custom_call.1} parent=1 // loop_body
      %s24 = ssub.s32 %s19, 1
      %s25 = ssub.s32 %s19, 2
      %s32 = sadd.s32 1, %s27
      %p33 = scmp.ge.s32.totalorder %s32, 2
      %s34 = scalar_select %p33, 0, %s32
      %s35 = sadd.s32 1, %s26
      %s36 = scalar_select %p33, %s35, %s26
      %p37 = scmp.ge.s32.totalorder %s36, 2
      %s38 = scalar_select %p37, 0, %s36
      %s39 = ssub.s32 %s26, %s38
      %s40 = ssub.s32 %s27, %s34
      %s41 = sor.u32 %s39, %s40
      %p42 = scmp.eq.s32.totalorder %s41, 0
      %s44 = sadd.s32 %s43, 1
      %s45 = scalar_select %p42, %s43, %s44
      %p48 = pneg %p42
      %p49 = scmp.eq.s32.totalorder %s19, 3
      %p50 = por %p48, %p49
      %p51 = scmp.ne.s32.totalorder %s43, %s46
      %p52 = scmp.eq.s32.totalorder %s19, 0
      %p53 = por %p51, %p52
      %p54 = scmp.ne.s32.totalorder %s43, %s46
      %p55 = scmp.eq.s32.totalorder %s24, 3
      %p56 = por %p54, %p55
      %p57 = scmp.ne.s32.totalorder %s46, %s47
      %p58 = scmp.eq.s32.totalorder %s24, 0
      %p59 = por %p57, %p58
      %p60 = scmp.ne.s32.totalorder %s46, %s47
      %p61 = scmp.eq.s32.totalorder %s25, 3
      %p62 = por %p60, %p61
      %p64 = scmp.ne.s32.totalorder %s47, %s63
      %p65 = scmp.eq.s32.totalorder %s25, 0
      %p66 = por %p64, %p65
      %s68 = sadd.s32 %s67, 1
      %p71 = scmp.eq.s32.totalorder %s19, 3
      %p72 = scmp.ne.s32.totalorder %s67, %s69
      %p73 = scmp.eq.s32.totalorder %s19, 0
      %p74 = por %p72, %p73
      %p75 = scmp.ne.s32.totalorder %s67, %s69
      %p76 = scmp.eq.s32.totalorder %s24, 3
      %p77 = por %p75, %p76
      %p78 = scmp.ne.s32.totalorder %s69, %s70
      %p79 = scmp.eq.s32.totalorder %s24, 0
      %p80 = por %p78, %p79
      %p81 = scmp.ne.s32.totalorder %s69, %s70
      %p82 = scmp.eq.s32.totalorder %s25, 3
      %p83 = por %p81, %p82
      %p85 = scmp.ne.s32.totalorder %s70, %s84
      %p86 = scmp.eq.s32.totalorder %s25, 0
      %p87 = por %p85, %p86
      %s89 = sadd.s32 %s88, 1
      %p92 = scmp.eq.s32.totalorder %s19, 3
      %p93 = scmp.ne.s32.totalorder %s88, %s90
      %p94 = scmp.eq.s32.totalorder %s19, 0
      %p95 = por %p93, %p94
      %p96 = scmp.ne.s32.totalorder %s88, %s90
      %p97 = scmp.eq.s32.totalorder %s24, 3
      %p98 = por %p96, %p97
      %p99 = scmp.ne.s32.totalorder %s90, %s91
      %p100 = scmp.eq.s32.totalorder %s24, 0
      %p101 = por %p99, %p100
      %p102 = scmp.ne.s32.totalorder %s90, %s91
      %p103 = scmp.eq.s32.totalorder %s25, 3
      %p104 = por %p102, %p103
      %p106 = scmp.ne.s32.totalorder %s91, %s105
      %p107 = scmp.eq.s32.totalorder %s25, 0
      %p108 = por %p106, %p107
      %s110 = sadd.s32 %s109, 1
      %p113 = scmp.eq.s32.totalorder %s19, 3
      %p114 = scmp.ne.s32.totalorder %s109, %s111
      %p115 = scmp.eq.s32.totalorder %s19, 0
      %p116 = por %p114, %p115
      %p117 = scmp.ne.s32.totalorder %s109, %s111
      %p118 = scmp.eq.s32.totalorder %s24, 3
      %p119 = por %p117, %p118
      %p120 = scmp.ne.s32.totalorder %s111, %s112
      %p121 = scmp.eq.s32.totalorder %s24, 0
      %p122 = por %p120, %p121
      %p123 = scmp.ne.s32.totalorder %s111, %s112
      %p124 = scmp.eq.s32.totalorder %s25, 3
      %p125 = por %p123, %p124
      %p127 = scmp.ne.s32.totalorder %s112, %s126
      %p128 = scmp.eq.s32.totalorder %s25, 0
      %p129 = por %p127, %p128
      %s131 = sadd.s32 %s130, 1
      %p134 = scmp.eq.s32.totalorder %s19, 3
      %p135 = scmp.ne.s32.totalorder %s130, %s132
      %p136 = scmp.eq.s32.totalorder %s19, 0
      %p137 = por %p135, %p136
      %p138 = scmp.ne.s32.totalorder %s130, %s132
      %p139 = scmp.eq.s32.totalorder %s24, 3
      %p140 = por %p138, %p139
      %p141 = scmp.ne.s32.totalorder %s132, %s133
      %p142 = scmp.eq.s32.totalorder %s24, 0
      %p143 = por %p141, %p142
      %p144 = scmp.ne.s32.totalorder %s132, %s133
      %p145 = scmp.eq.s32.totalorder %s25, 3
      %p146 = por %p144, %p145
      %p148 = scmp.ne.s32.totalorder %s133, %s147
      %p149 = scmp.eq.s32.totalorder %s25, 0
      %p150 = por %p148, %p149
      %s151 = ssub.s32 %s26, %s38
      %p152 = scmp.eq.s32.totalorder %s151, 0
      %s154 = sadd.s32 %s153, 1
      %s155 = scalar_select %p152, %s153, %s154
      %p158 = pneg %p152
      %p159 = scmp.eq.s32.totalorder %s19, 3
      %p160 = por %p158, %p159
      %p161 = scmp.ne.s32.totalorder %s153, %s156
      %p162 = scmp.eq.s32.totalorder %s19, 0
      %p163 = por %p161, %p162
      %p164 = scmp.ne.s32.totalorder %s153, %s156
      %p165 = scmp.eq.s32.totalorder %s24, 3
      %p166 = por %p164, %p165
      %p167 = scmp.ne.s32.totalorder %s156, %s157
      %p168 = scmp.eq.s32.totalorder %s24, 0
      %p169 = por %p167, %p168
      %p170 = scmp.ne.s32.totalorder %s156, %s157
      %p171 = scmp.eq.s32.totalorder %s25, 3
      %p172 = por %p170, %p171
      %p174 = scmp.ne.s32.totalorder %s157, %s173
      %p175 = scmp.eq.s32.totalorder %s25, 0
      %p176 = por %p174, %p175
      %p177 = scmp.le.s32.totalorder 1, %s19
      %p178 = scmp.lt.s32.totalorder %s19, 5
      %p179 = pnand %p177, %p178
      %p180 = pneg %p179
      // Predicated region
      $region9: #{tpu_custom_call.1} parent=5 // pred_check
        _
      $region10: #{tpu_custom_call.1} parent=5 // pred_check_branch
        %182 = sbr.rel (%p179) target = $region12
      $region11: #{tpu_custom_call.1} parent=5 // pred_region
        %s183 = ssub.s32 %s19, 1
        // Predicated region
        $region13: #{tpu_custom_call.1} parent=11 // pred_check
          %p184 = pneg %p80
        $region14: #{tpu_custom_call.1} parent=11 // pred_check_branch
          %186 = sbr.rel (%p184) target = $region16
        $region15: #{tpu_custom_call.1} parent=11 // pred_region
          %s188 = ssub.s32 2048, 2048
          %189 = vsyncadd [#allocation7], %s188
          %s190 = sshll.u32 [#allocation6], 4
          %s191 = int_to_ptr.vmem [resolvable:$true] %s190
          %196 = dma.hbm_to_vmem [thread:$0]  %s1, 2048, %s191, [#allocation7], 128, 128, 8
        $region16: #{tpu_custom_call.1} parent=11 // pred_fallthru
          _
        // Predicated region
        $region17: #{tpu_custom_call.1} parent=11 // pred_check
          %p197 = pneg %p101
        $region18: #{tpu_custom_call.1} parent=11 // pred_check_branch
          %199 = sbr.rel (%p197) target = $region20
        $region19: #{tpu_custom_call.1} parent=11 // pred_region
          %s201 = ssub.s32 2048, 2048
          %202 = vsyncadd [#allocation7], %s201
          %s203 = sshll.u32 [#allocation8], 4
          %s204 = int_to_ptr.vmem [resolvable:$true] %s203
          %209 = dma.hbm_to_vmem [thread:$0]  %s2, 2048, %s204, [#allocation7], 128, 128, 8
        $region20: #{tpu_custom_call.1} parent=11 // pred_fallthru
          _
        // Predicated region
        $region21: #{tpu_custom_call.1} parent=11 // pred_check
          %p210 = pneg %p122
        $region22: #{tpu_custom_call.1} parent=11 // pred_check_branch
          %212 = sbr.rel (%p210) target = $region24
        $region23: #{tpu_custom_call.1} parent=11 // pred_region
          %s214 = ssub.s32 2048, 2048
          %215 = vsyncadd [#allocation10], %s214
          %s216 = sshll.u32 [#allocation9], 4
          %s217 = int_to_ptr.vmem [resolvable:$true] %s216
          %222 = dma.hbm_to_vmem [thread:$0]  %s3, 2048, %s217, [#allocation10], 128, 128, 8
        $region24: #{tpu_custom_call.1} parent=11 // pred_fallthru
          _
        // Predicated region
        $region25: #{tpu_custom_call.1} parent=11 // pred_check
          %p223 = pneg %p143
        $region26: #{tpu_custom_call.1} parent=11 // pred_check_branch
          %225 = sbr.rel (%p223) target = $region28
        $region27: #{tpu_custom_call.1} parent=11 // pred_region
          %s227 = ssub.s32 16, 16
          %228 = vsyncadd [#allocation10], %s227
          %s230 = sshll.u32 [#allocation11], 4
          %s231 = int_to_ptr.vmem [resolvable:$true] %s230
          %233 = dma.hbm_to_vmem [thread:$0]  %s4, 16, %s231, [#allocation10]
        $region28: #{tpu_custom_call.1} parent=11 // pred_fallthru
          _
      $region12: #{tpu_custom_call.1} parent=5 // pred_fallthru
        _
      %p234 = scmp.lt.s32.totalorder %s19, 4
      // Predicated region
      $region29: #{tpu_custom_call.1} parent=5 // pred_check
        %p235 = pneg %p234
      $region30: #{tpu_custom_call.1} parent=5 // pred_check_branch
        %237 = sbr.rel (%p235) target = $region32
      $region31: #{tpu_custom_call.1} parent=5 // pred_region
        // Predicated region
        $region33: #{tpu_custom_call.1} parent=31 // pred_check
          %p238 = pneg %p53
        $region34: #{tpu_custom_call.1} parent=31 // pred_check_branch
          %240 = sbr.rel (%p238) target = $region36
        $region35: #{tpu_custom_call.1} parent=31 // pred_region
          %s241 = sand.u32 %s43, 1
          %s242 = scalar_lea.sflag [#allocation4], %s241
          %s243 = sand.u32 %s43, 1
          %s244 = smul.addr %s243, 4
          %s245 = scalar_lea.vmem [#allocation3], %s244
          %s247 = ssub.s32 64, 64
          %248 = vsyncadd %s242, %s247
          %s249 = smul.addr %s26, 2
          %s250 = sadd.s32 %s27, %s249
          %s251 = smul.addr %s250, 64
          %s252 = scalar_lea.hbm %s0, %s251
          %s254 = sshll.u32 %s245, 4
          %s255 = int_to_ptr.vmem [resolvable:$true] %s254
          %257 = dma.hbm_to_vmem [thread:$0]  %s252, 64, %s255, %s242
        $region36: #{tpu_custom_call.1} parent=31 // pred_fallthru
          _
      $region32: #{tpu_custom_call.1} parent=5 // pred_fallthru
        _
      %p258 = scmp.le.s32.totalorder 1, %s19
      %p259 = scmp.lt.s32.totalorder %s19, 5
      %p260 = pnand %p258, %p259
      %p261 = pneg %p260
      // Predicated region
      $region37: #{tpu_custom_call.1} parent=5 // pred_check
        _
      $region38: #{tpu_custom_call.1} parent=5 // pred_check_branch
        %263 = sbr.rel (%p260) target = $region40
      $region39: #{tpu_custom_call.1} parent=5 // pred_region
        %s264 = ssub.s32 %s19, 1
        %s265 = sand.u32 %s46, 1
        %s266 = scalar_lea.sflag [#allocation4], %s265
        %s267 = sand.u32 %s46, 1
        %s268 = smul.addr %s267, 4
        %s269 = scalar_lea.vmem [#allocation3], %s268
        // Predicated region
        $region41: #{tpu_custom_call.1} parent=39 // pred_check
          %p270 = pneg %p59
        $region42: #{tpu_custom_call.1} parent=39 // pred_check_branch
          %272 = sbr.rel (%p270) target = $region44
        $region43: #{tpu_custom_call.1} parent=39 // pred_region
          %273 = dma.done %s266, 64
        $region44: #{tpu_custom_call.1} parent=39 // pred_fallthru
          _
        // Predicated region
        $region45: #{tpu_custom_call.1} parent=39 // pred_check
          %p274 = pneg %p80
        $region46: #{tpu_custom_call.1} parent=39 // pred_check_branch
          %276 = sbr.rel (%p274) target = $region48
        $region47: #{tpu_custom_call.1} parent=39 // pred_region
          %277 = dma.done [#allocation7], 2048
        $region48: #{tpu_custom_call.1} parent=39 // pred_fallthru
          _
        // Predicated region
        $region49: #{tpu_custom_call.1} parent=39 // pred_check
          %p278 = pneg %p101
        $region50: #{tpu_custom_call.1} parent=39 // pred_check_branch
          %280 = sbr.rel (%p278) target = $region52
        $region51: #{tpu_custom_call.1} parent=39 // pred_region
          %281 = dma.done [#allocation7], 2048
        $region52: #{tpu_custom_call.1} parent=39 // pred_fallthru
          _
        // Predicated region
        $region53: #{tpu_custom_call.1} parent=39 // pred_check
          %p282 = pneg %p122
        $region54: #{tpu_custom_call.1} parent=39 // pred_check_branch
          %284 = sbr.rel (%p282) target = $region56
        $region55: #{tpu_custom_call.1} parent=39 // pred_region
          %285 = dma.done [#allocation10], 2048
        $region56: #{tpu_custom_call.1} parent=39 // pred_fallthru
          _
        // Predicated region
        $region57: #{tpu_custom_call.1} parent=39 // pred_check
          %p286 = pneg %p143
        $region58: #{tpu_custom_call.1} parent=39 // pred_check_branch
          %288 = sbr.rel (%p286) target = $region60
        $region59: #{tpu_custom_call.1} parent=39 // pred_region
          %289 = dma.done [#allocation10], 16
        $region60: #{tpu_custom_call.1} parent=39 // pred_fallthru
          _
        %s290 = sand.u32 %s46, 1
        %s291 = scalar_lea.sflag [#allocation4], %s290
        %s292 = sand.u32 %s46, 1
        %s293 = smul.addr %s292, 4
        %s294 = scalar_lea.vmem [#allocation3], %s293
        %p295 = pneg %p59
        %p296 = pneg %p56
        %p297 = pneg %p80
        %p298 = pneg %p77
        %p299 = pneg %p101
        %p300 = pneg %p98
        %p301 = pneg %p122
        %p302 = pneg %p119
        %p303 = pneg %p143
        %p304 = pneg %p140
        %p305 = pneg %p169
        %p306 = pneg %p166
        %s307 = sand.u32 %s156, 1
        %s308 = scalar_lea.sflag [#allocation5], %s307
        %s309 = sand.u32 %s156, 1
        %s310 = scalar_lea.vmem [#allocation12], %s309
        %p312 = scmp.eq.s32.totalorder %s29, 0
        // Predicated region
        $region61: #{tpu_custom_call.1} parent=39 // pred_check
          %p313 = pneg %p312
        $region62: #{tpu_custom_call.1} parent=39 // pred_check_branch
          %315 = sbr.rel (%p313) target = $region64
        $region63: #{tpu_custom_call.1} parent=39 // pred_region
          %316 = vst [vmem:[#allocation2] sm:$0xff] 0.0
          %317 = vst [vmem:[#allocation2 + $0x8] sm:$0xff] 0.0
          %318 = vst [vmem:[#allocation2 + $0x10] sm:$0xff] 0.0
          %319 = vst [vmem:[#allocation2 + $0x18] sm:$0xff] 0.0
          %320 = vst [vmem:[#allocation2 + $0x20] sm:$0xff] 0.0
          %321 = vst [vmem:[#allocation2 + $0x28] sm:$0xff] 0.0
          %322 = vst [vmem:[#allocation2 + $0x30] sm:$0xff] 0.0
          %323 = vst [vmem:[#allocation2 + $0x38] sm:$0xff] 0.0
          %324 = vst [vmem:[#allocation2 + $0x40] sm:$0xff] 0.0
          %325 = vst [vmem:[#allocation2 + $0x48] sm:$0xff] 0.0
          %326 = vst [vmem:[#allocation2 + $0x50] sm:$0xff] 0.0
          %327 = vst [vmem:[#allocation2 + $0x58] sm:$0xff] 0.0
          %328 = vst [vmem:[#allocation2 + $0x60] sm:$0xff] 0.0
          %329 = vst [vmem:[#allocation2 + $0x68] sm:$0xff] 0.0
          %330 = vst [vmem:[#allocation2 + $0x70] sm:$0xff] 0.0
          %331 = vst [vmem:[#allocation2 + $0x78] sm:$0xff] 0.0
        $region64: #{tpu_custom_call.1} parent=39 // pred_fallthru
          _
        %v332 = vld [vmem:[%s269] sm:$0xf]
        %v333 = vld [vmem:[#allocation6] sm:$0xff]
        %v334 = vld [vmem:[#allocation6 + $0x8] sm:$0xff]
        %v335 = vld [vmem:[#allocation6 + $0x10] sm:$0xff]
        %v336 = vld [vmem:[#allocation6 + $0x18] sm:$0xff]
        %v337 = vld [vmem:[#allocation6 + $0x20] sm:$0xff]
        %v338 = vld [vmem:[#allocation6 + $0x28] sm:$0xff]
        %v339 = vld [vmem:[#allocation6 + $0x30] sm:$0xff]
        %v340 = vld [vmem:[#allocation6 + $0x38] sm:$0xff]
        %v341 = vld [vmem:[#allocation6 + $0x40] sm:$0xff]
        %v342 = vld [vmem:[#allocation6 + $0x48] sm:$0xff]
        %v343 = vld [vmem:[#allocation6 + $0x50] sm:$0xff]
        %v344 = vld [vmem:[#allocation6 + $0x58] sm:$0xff]
        %v345 = vld [vmem:[#allocation6 + $0x60] sm:$0xff]
        %v346 = vld [vmem:[#allocation6 + $0x68] sm:$0xff]
        %v347 = vld [vmem:[#allocation6 + $0x70] sm:$0xff]
        %v348 = vld [vmem:[#allocation6 + $0x78] sm:$0xff]
        %350 = vset.pattern.permute.xlu0 0
        %351 = vperm.xlu0 %350, %v333
        %v352 = vpop.permute.xlu0 %351
        %355 = vset.pattern.permute.xlu0 0
        %356 = vperm.xlu0 %355, %v334
        %v357 = vpop.permute.xlu0 %356
        %360 = vset.pattern.permute.xlu0 0
        %361 = vperm.xlu0 %360, %v335
        %v362 = vpop.permute.xlu0 %361
        %365 = vset.pattern.permute.xlu0 0
        %366 = vperm.xlu0 %365, %v336
        %v367 = vpop.permute.xlu0 %366
        %370 = vset.pattern.permute.xlu0 0
        %371 = vperm.xlu0 %370, %v337
        %v372 = vpop.permute.xlu0 %371
        %375 = vset.pattern.permute.xlu0 0
        %376 = vperm.xlu0 %375, %v338
        %v377 = vpop.permute.xlu0 %376
        %380 = vset.pattern.permute.xlu0 0
        %381 = vperm.xlu0 %380, %v339
        %v382 = vpop.permute.xlu0 %381
        %385 = vset.pattern.permute.xlu0 0
        %386 = vperm.xlu0 %385, %v340
        %v387 = vpop.permute.xlu0 %386
        %390 = vset.pattern.permute.xlu0 0
        %391 = vperm.xlu0 %390, %v341
        %v392 = vpop.permute.xlu0 %391
        %395 = vset.pattern.permute.xlu0 0
        %396 = vperm.xlu0 %395, %v342
        %v397 = vpop.permute.xlu0 %396
        %400 = vset.pattern.permute.xlu0 0
        %401 = vperm.xlu0 %400, %v343
        %v402 = vpop.permute.xlu0 %401
        %405 = vset.pattern.permute.xlu0 0
        %406 = vperm.xlu0 %405, %v344
        %v407 = vpop.permute.xlu0 %406
        %410 = vset.pattern.permute.xlu0 0
        %411 = vperm.xlu0 %410, %v345
        %v412 = vpop.permute.xlu0 %411
        %415 = vset.pattern.permute.xlu0 0
        %416 = vperm.xlu0 %415, %v346
        %v417 = vpop.permute.xlu0 %416
        %420 = vset.pattern.permute.xlu0 0
        %421 = vperm.xlu0 %420, %v347
        %v422 = vpop.permute.xlu0 %421
        %425 = vset.pattern.permute.xlu0 0
        %426 = vperm.xlu0 %425, %v348
        %v427 = vpop.permute.xlu0 %426
        %v429 = vlaneseq
        %v430 = vshrl.u32 %v429, 7
        %v431 = vsub.s32 0, %v430
        %v432 = vrot.slane %v332, %v431
        %v433 = vmul.f32 %v352, %v432
        %v434 = vmul.f32 %v357, %v432
        %v435 = vmul.f32 %v362, %v432
        %v436 = vmul.f32 %v367, %v432
        %v437 = vmul.f32 %v372, %v432
        %v438 = vmul.f32 %v377, %v432
        %v439 = vmul.f32 %v382, %v432
        %v440 = vmul.f32 %v387, %v432
        %v441 = vmul.f32 %v392, %v432
        %v442 = vmul.f32 %v397, %v432
        %v443 = vmul.f32 %v402, %v432
        %v444 = vmul.f32 %v407, %v432
        %v445 = vmul.f32 %v412, %v432
        %v446 = vmul.f32 %v417, %v432
        %v447 = vmul.f32 %v422, %v432
        %v448 = vmul.f32 %v427, %v432
        %449 = vset.pattern.permute.xlu0 1
        %450 = vperm.xlu0 %449, %v333
        %v451 = vpop.permute.xlu0 %450
        %453 = vset.pattern.permute.xlu0 1
        %454 = vperm.xlu0 %453, %v334
        %v455 = vpop.permute.xlu0 %454
        %457 = vset.pattern.permute.xlu0 1
        %458 = vperm.xlu0 %457, %v335
        %v459 = vpop.permute.xlu0 %458
        %461 = vset.pattern.permute.xlu0 1
        %462 = vperm.xlu0 %461, %v336
        %v463 = vpop.permute.xlu0 %462
        %465 = vset.pattern.permute.xlu0 1
        %466 = vperm.xlu0 %465, %v337
        %v467 = vpop.permute.xlu0 %466
        %469 = vset.pattern.permute.xlu0 1
        %470 = vperm.xlu0 %469, %v338
        %v471 = vpop.permute.xlu0 %470
        %473 = vset.pattern.permute.xlu0 1
        %474 = vperm.xlu0 %473, %v339
        %v475 = vpop.permute.xlu0 %474
        %477 = vset.pattern.permute.xlu0 1
        %478 = vperm.xlu0 %477, %v340
        %v479 = vpop.permute.xlu0 %478
        %481 = vset.pattern.permute.xlu0 1
        %482 = vperm.xlu0 %481, %v341
        %v483 = vpop.permute.xlu0 %482
        %485 = vset.pattern.permute.xlu0 1
        %486 = vperm.xlu0 %485, %v342
        %v487 = vpop.permute.xlu0 %486
        %489 = vset.pattern.permute.xlu0 1
        %490 = vperm.xlu0 %489, %v343
        %v491 = vpop.permute.xlu0 %490
        %493 = vset.pattern.permute.xlu0 1
        %494 = vperm.xlu0 %493, %v344
        %v495 = vpop.permute.xlu0 %494
        %497 = vset.pattern.permute.xlu0 1
        %498 = vperm.xlu0 %497, %v345
        %v499 = vpop.permute.xlu0 %498
        %501 = vset.pattern.permute.xlu0 1
        %502 = vperm.xlu0 %501, %v346
        %v503 = vpop.permute.xlu0 %502
        %505 = vset.pattern.permute.xlu0 1
        %506 = vperm.xlu0 %505, %v347
        %v507 = vpop.permute.xlu0 %506
        %509 = vset.pattern.permute.xlu0 1
        %510 = vperm.xlu0 %509, %v348
        %v511 = vpop.permute.xlu0 %510
        %v513 = vlaneseq
        %v514 = vshrl.u32 %v513, 7
        %v515 = vsub.s32 1, %v514
        %v516 = vrot.slane %v332, %v515
        %v517 = vmul.f32 %v451, %v516
        %v518 = vmul.f32 %v455, %v516
        %v519 = vmul.f32 %v459, %v516
        %v520 = vmul.f32 %v463, %v516
        %v521 = vmul.f32 %v467, %v516
        %v522 = vmul.f32 %v471, %v516
        %v523 = vmul.f32 %v475, %v516
        %v524 = vmul.f32 %v479, %v516
        %v525 = vmul.f32 %v483, %v516
        %v526 = vmul.f32 %v487, %v516
        %v527 = vmul.f32 %v491, %v516
        %v528 = vmul.f32 %v495, %v516
        %v529 = vmul.f32 %v499, %v516
        %v530 = vmul.f32 %v503, %v516
        %v531 = vmul.f32 %v507, %v516
        %v532 = vmul.f32 %v511, %v516
        %v533 = vadd.f32 %v433, %v517
        %v534 = vadd.f32 %v434, %v518
        %v535 = vadd.f32 %v435, %v519
        %v536 = vadd.f32 %v436, %v520
        %v537 = vadd.f32 %v437, %v521
        %v538 = vadd.f32 %v438, %v522
        %v539 = vadd.f32 %v439, %v523
        %v540 = vadd.f32 %v440, %v524
        %v541 = vadd.f32 %v441, %v525
        %v542 = vadd.f32 %v442, %v526
        %v543 = vadd.f32 %v443, %v527
        %v544 = vadd.f32 %v444, %v528
        %v545 = vadd.f32 %v445, %v529
        %v546 = vadd.f32 %v446, %v530
        %v547 = vadd.f32 %v447, %v531
        %v548 = vadd.f32 %v448, %v532
        %549 = vset.pattern.permute.xlu0 2
        %550 = vperm.xlu0 %549, %v333
        %v551 = vpop.permute.xlu0 %550
        %553 = vset.pattern.permute.xlu0 2
        %554 = vperm.xlu0 %553, %v334
        %v555 = vpop.permute.xlu0 %554
        %557 = vset.pattern.permute.xlu0 2
        %558 = vperm.xlu0 %557, %v335
        %v559 = vpop.permute.xlu0 %558
        %561 = vset.pattern.permute.xlu0 2
        %562 = vperm.xlu0 %561, %v336
        %v563 = vpop.permute.xlu0 %562
        %565 = vset.pattern.permute.xlu0 2
        %566 = vperm.xlu0 %565, %v337
        %v567 = vpop.permute.xlu0 %566
        %569 = vset.pattern.permute.xlu0 2
        %570 = vperm.xlu0 %569, %v338
        %v571 = vpop.permute.xlu0 %570
        %573 = vset.pattern.permute.xlu0 2
        %574 = vperm.xlu0 %573, %v339
        %v575 = vpop.permute.xlu0 %574
        %577 = vset.pattern.permute.xlu0 2
        %578 = vperm.xlu0 %577, %v340
        %v579 = vpop.permute.xlu0 %578
        %581 = vset.pattern.permute.xlu0 2
        %582 = vperm.xlu0 %581, %v341
        %v583 = vpop.permute.xlu0 %582
        %585 = vset.pattern.permute.xlu0 2
        %586 = vperm.xlu0 %585, %v342
        %v587 = vpop.permute.xlu0 %586
        %589 = vset.pattern.permute.xlu0 2
        %590 = vperm.xlu0 %589, %v343
        %v591 = vpop.permute.xlu0 %590
        %593 = vset.pattern.permute.xlu0 2
        %594 = vperm.xlu0 %593, %v344
        %v595 = vpop.permute.xlu0 %594
        %597 = vset.pattern.permute.xlu0 2
        %598 = vperm.xlu0 %597, %v345
        %v599 = vpop.permute.xlu0 %598
        %601 = vset.pattern.permute.xlu0 2
        %602 = vperm.xlu0 %601, %v346
        %v603 = vpop.permute.xlu0 %602
        %605 = vset.pattern.permute.xlu0 2
        %606 = vperm.xlu0 %605, %v347
        %v607 = vpop.permute.xlu0 %606
        %609 = vset.pattern.permute.xlu0 2
        %610 = vperm.xlu0 %609, %v348
        %v611 = vpop.permute.xlu0 %610
        %v613 = vlaneseq
        %v614 = vshrl.u32 %v613, 7
        %v615 = vsub.s32 2, %v614
        %v616 = vrot.slane %v332, %v615
        %v617 = vmul.f32 %v551, %v616
        %v618 = vmul.f32 %v555, %v616
        %v619 = vmul.f32 %v559, %v616
        %v620 = vmul.f32 %v563, %v616
        %v621 = vmul.f32 %v567, %v616
        %v622 = vmul.f32 %v571, %v616
        %v623 = vmul.f32 %v575, %v616
        %v624 = vmul.f32 %v579, %v616
        %v625 = vmul.f32 %v583, %v616
        %v626 = vmul.f32 %v587, %v616
        %v627 = vmul.f32 %v591, %v616
        %v628 = vmul.f32 %v595, %v616
        %v629 = vmul.f32 %v599, %v616
        %v630 = vmul.f32 %v603, %v616
        %v631 = vmul.f32 %v607, %v616
        %v632 = vmul.f32 %v611, %v616
        %v633 = vadd.f32 %v533, %v617
        %v634 = vadd.f32 %v534, %v618
        %v635 = vadd.f32 %v535, %v619
        %v636 = vadd.f32 %v536, %v620
        %v637 = vadd.f32 %v537, %v621
        %v638 = vadd.f32 %v538, %v622
        %v639 = vadd.f32 %v539, %v623
        %v640 = vadd.f32 %v540, %v624
        %v641 = vadd.f32 %v541, %v625
        %v642 = vadd.f32 %v542, %v626
        %v643 = vadd.f32 %v543, %v627
        %v644 = vadd.f32 %v544, %v628
        %v645 = vadd.f32 %v545, %v629
        %v646 = vadd.f32 %v546, %v630
        %v647 = vadd.f32 %v547, %v631
        %v648 = vadd.f32 %v548, %v632
        %649 = vset.pattern.permute.xlu0 3
        %650 = vperm.xlu0 %649, %v333
        %v651 = vpop.permute.xlu0 %650
        %653 = vset.pattern.permute.xlu0 3
        %654 = vperm.xlu0 %653, %v334
        %v655 = vpop.permute.xlu0 %654
        %657 = vset.pattern.permute.xlu0 3
        %658 = vperm.xlu0 %657, %v335
        %v659 = vpop.permute.xlu0 %658
        %661 = vset.pattern.permute.xlu0 3
        %662 = vperm.xlu0 %661, %v336
        %v663 = vpop.permute.xlu0 %662
        %665 = vset.pattern.permute.xlu0 3
        %666 = vperm.xlu0 %665, %v337
        %v667 = vpop.permute.xlu0 %666
        %669 = vset.pattern.permute.xlu0 3
        %670 = vperm.xlu0 %669, %v338
        %v671 = vpop.permute.xlu0 %670
        %673 = vset.pattern.permute.xlu0 3
        %674 = vperm.xlu0 %673, %v339
        %v675 = vpop.permute.xlu0 %674
        %677 = vset.pattern.permute.xlu0 3
        %678 = vperm.xlu0 %677, %v340
        %v679 = vpop.permute.xlu0 %678
        %681 = vset.pattern.permute.xlu0 3
        %682 = vperm.xlu0 %681, %v341
        %v683 = vpop.permute.xlu0 %682
        %685 = vset.pattern.permute.xlu0 3
        %686 = vperm.xlu0 %685, %v342
        %v687 = vpop.permute.xlu0 %686
        %689 = vset.pattern.permute.xlu0 3
        %690 = vperm.xlu0 %689, %v343
        %v691 = vpop.permute.xlu0 %690
        %693 = vset.pattern.permute.xlu0 3
        %694 = vperm.xlu0 %693, %v344
        %v695 = vpop.permute.xlu0 %694
        %697 = vset.pattern.permute.xlu0 3
        %698 = vperm.xlu0 %697, %v345
        %v699 = vpop.permute.xlu0 %698
        %701 = vset.pattern.permute.xlu0 3
        %702 = vperm.xlu0 %701, %v346
        %v703 = vpop.permute.xlu0 %702
        %705 = vset.pattern.permute.xlu0 3
        %706 = vperm.xlu0 %705, %v347
        %v707 = vpop.permute.xlu0 %706
        %709 = vset.pattern.permute.xlu0 3
        %710 = vperm.xlu0 %709, %v348
        %v711 = vpop.permute.xlu0 %710
        %v713 = vlaneseq
        %v714 = vshrl.u32 %v713, 7
        %v715 = vsub.s32 3, %v714
        %v716 = vrot.slane %v332, %v715
        %v717 = vmul.f32 %v651, %v716
        %v718 = vmul.f32 %v655, %v716
        %v719 = vmul.f32 %v659, %v716
        %v720 = vmul.f32 %v663, %v716
        %v721 = vmul.f32 %v667, %v716
        %v722 = vmul.f32 %v671, %v716
        %v723 = vmul.f32 %v675, %v716
        %v724 = vmul.f32 %v679, %v716
        %v725 = vmul.f32 %v683, %v716
        %v726 = vmul.f32 %v687, %v716
        %v727 = vmul.f32 %v691, %v716
        %v728 = vmul.f32 %v695, %v716
        %v729 = vmul.f32 %v699, %v716
        %v730 = vmul.f32 %v703, %v716
        %v731 = vmul.f32 %v707, %v716
        %v732 = vmul.f32 %v711, %v716
        %v733 = vadd.f32 %v633, %v717
        %v734 = vadd.f32 %v634, %v718
        %v735 = vadd.f32 %v635, %v719
        %v736 = vadd.f32 %v636, %v720
        %v737 = vadd.f32 %v637, %v721
        %v738 = vadd.f32 %v638, %v722
        %v739 = vadd.f32 %v639, %v723
        %v740 = vadd.f32 %v640, %v724
        %v741 = vadd.f32 %v641, %v725
        %v742 = vadd.f32 %v642, %v726
        %v743 = vadd.f32 %v643, %v727
        %v744 = vadd.f32 %v644, %v728
        %v745 = vadd.f32 %v645, %v729
        %v746 = vadd.f32 %v646, %v730
        %v747 = vadd.f32 %v647, %v731
        %v748 = vadd.f32 %v648, %v732
        %v749 = vld [vmem:[#allocation8] sm:$0xff]
        %v750 = vld [vmem:[#allocation8 + $0x8] sm:$0xff]
        %v751 = vld [vmem:[#allocation8 + $0x10] sm:$0xff]
        %v752 = vld [vmem:[#allocation8 + $0x18] sm:$0xff]
        %v753 = vld [vmem:[#allocation8 + $0x20] sm:$0xff]
        %v754 = vld [vmem:[#allocation8 + $0x28] sm:$0xff]
        %v755 = vld [vmem:[#allocation8 + $0x30] sm:$0xff]
        %v756 = vld [vmem:[#allocation8 + $0x38] sm:$0xff]
        %v757 = vld [vmem:[#allocation8 + $0x40] sm:$0xff]
        %v758 = vld [vmem:[#allocation8 + $0x48] sm:$0xff]
        %v759 = vld [vmem:[#allocation8 + $0x50] sm:$0xff]
        %v760 = vld [vmem:[#allocation8 + $0x58] sm:$0xff]
        %v761 = vld [vmem:[#allocation8 + $0x60] sm:$0xff]
        %v762 = vld [vmem:[#allocation8 + $0x68] sm:$0xff]
        %v763 = vld [vmem:[#allocation8 + $0x70] sm:$0xff]
        %v764 = vld [vmem:[#allocation8 + $0x78] sm:$0xff]
        %766 = vset.pattern.permute.xlu0 0
        %767 = vperm.xlu0 %766, %v749
        %v768 = vpop.permute.xlu0 %767
        %771 = vset.pattern.permute.xlu0 0
        %772 = vperm.xlu0 %771, %v750
        %v773 = vpop.permute.xlu0 %772
        %776 = vset.pattern.permute.xlu0 0
        %777 = vperm.xlu0 %776, %v751
        %v778 = vpop.permute.xlu0 %777
        %781 = vset.pattern.permute.xlu0 0
        %782 = vperm.xlu0 %781, %v752
        %v783 = vpop.permute.xlu0 %782
        %786 = vset.pattern.permute.xlu0 0
        %787 = vperm.xlu0 %786, %v753
        %v788 = vpop.permute.xlu0 %787
        %791 = vset.pattern.permute.xlu0 0
        %792 = vperm.xlu0 %791, %v754
        %v793 = vpop.permute.xlu0 %792
        %796 = vset.pattern.permute.xlu0 0
        %797 = vperm.xlu0 %796, %v755
        %v798 = vpop.permute.xlu0 %797
        %801 = vset.pattern.permute.xlu0 0
        %802 = vperm.xlu0 %801, %v756
        %v803 = vpop.permute.xlu0 %802
        %806 = vset.pattern.permute.xlu0 0
        %807 = vperm.xlu0 %806, %v757
        %v808 = vpop.permute.xlu0 %807
        %811 = vset.pattern.permute.xlu0 0
        %812 = vperm.xlu0 %811, %v758
        %v813 = vpop.permute.xlu0 %812
        %816 = vset.pattern.permute.xlu0 0
        %817 = vperm.xlu0 %816, %v759
        %v818 = vpop.permute.xlu0 %817
        %821 = vset.pattern.permute.xlu0 0
        %822 = vperm.xlu0 %821, %v760
        %v823 = vpop.permute.xlu0 %822
        %826 = vset.pattern.permute.xlu0 0
        %827 = vperm.xlu0 %826, %v761
        %v828 = vpop.permute.xlu0 %827
        %831 = vset.pattern.permute.xlu0 0
        %832 = vperm.xlu0 %831, %v762
        %v833 = vpop.permute.xlu0 %832
        %836 = vset.pattern.permute.xlu0 0
        %837 = vperm.xlu0 %836, %v763
        %v838 = vpop.permute.xlu0 %837
        %841 = vset.pattern.permute.xlu0 0
        %842 = vperm.xlu0 %841, %v764
        %v843 = vpop.permute.xlu0 %842
        %v845 = vadd.f32 %v733, %v768
        %v846 = vadd.f32 %v734, %v773
        %v847 = vadd.f32 %v735, %v778
        %v848 = vadd.f32 %v736, %v783
        %v849 = vadd.f32 %v737, %v788
        %v850 = vadd.f32 %v738, %v793
        %v851 = vadd.f32 %v739, %v798
        %v852 = vadd.f32 %v740, %v803
        %v853 = vadd.f32 %v741, %v808
        %v854 = vadd.f32 %v742, %v813
        %v855 = vadd.f32 %v743, %v818
        %v856 = vadd.f32 %v744, %v823
        %v857 = vadd.f32 %v745, %v828
        %v858 = vadd.f32 %v746, %v833
        %v859 = vadd.f32 %v747, %v838
        %v860 = vadd.f32 %v748, %v843
        %v861 = vpack.c.bf16 %v846, %v845
        %v862 = vpack.c.bf16 %v848, %v847
        %v863 = vpack.c.bf16 %v850, %v849
        %v864 = vpack.c.bf16 %v852, %v851
        %v865 = vpack.c.bf16 %v854, %v853
        %v866 = vpack.c.bf16 %v856, %v855
        %v867 = vpack.c.bf16 %v858, %v857
        %v868 = vpack.c.bf16 %v860, %v859
        %v869 = vxor.u32 %v861, 2147516416
        %v870 = vxor.u32 %v862, 2147516416
        %v871 = vxor.u32 %v863, 2147516416
        %v872 = vxor.u32 %v864, 2147516416
        %v873 = vxor.u32 %v865, 2147516416
        %v874 = vxor.u32 %v866, 2147516416
        %v875 = vxor.u32 %v867, 2147516416
        %v876 = vxor.u32 %v868, 2147516416
        %v878 = vmul.bf16 %v869, 1069105081
        %v879 = vpow.bf16.pop %v878
        %v881 = vmul.bf16 %v870, 1069105081
        %v882 = vpow.bf16.pop %v881
        %v884 = vmul.bf16 %v871, 1069105081
        %v885 = vpow.bf16.pop %v884
        %v887 = vmul.bf16 %v872, 1069105081
        %v888 = vpow.bf16.pop %v887
        %v890 = vmul.bf16 %v873, 1069105081
        %v891 = vpow.bf16.pop %v890
        %v893 = vmul.bf16 %v874, 1069105081
        %v894 = vpow.bf16.pop %v893
        %v896 = vmul.bf16 %v875, 1069105081
        %v897 = vpow.bf16.pop %v896
        %v899 = vmul.bf16 %v876, 1069105081
        %v900 = vpow.bf16.pop %v899
        %v901 = vadd.bf16 %v879, 1065369472
        %v902 = vadd.bf16 %v882, 1065369472
        %v903 = vadd.bf16 %v885, 1065369472
        %v904 = vadd.bf16 %v888, 1065369472
        %v905 = vadd.bf16 %v891, 1065369472
        %v906 = vadd.bf16 %v894, 1065369472
        %v907 = vadd.bf16 %v897, 1065369472
        %v908 = vadd.bf16 %v900, 1065369472
        %v909 = vrcp.bf16.pop %v901
        %v910 = vmul.bf16 1065369472, %v909
        %v911 = vrcp.bf16.pop %v902
        %v912 = vmul.bf16 1065369472, %v911
        %v913 = vrcp.bf16.pop %v903
        %v914 = vmul.bf16 1065369472, %v913
        %v915 = vrcp.bf16.pop %v904
        %v916 = vmul.bf16 1065369472, %v915
        %v917 = vrcp.bf16.pop %v905
        %v918 = vmul.bf16 1065369472, %v917
        %v919 = vrcp.bf16.pop %v906
        %v920 = vmul.bf16 1065369472, %v919
        %v921 = vrcp.bf16.pop %v907
        %v922 = vmul.bf16 1065369472, %v921
        %v923 = vrcp.bf16.pop %v908
        %v924 = vmul.bf16 1065369472, %v923
        %v925 = vunpack.c.l.bf16 %v910
        %v926 = vunpack.c.h.bf16 %v910
        %v927 = vunpack.c.l.bf16 %v912
        %v928 = vunpack.c.h.bf16 %v912
        %v929 = vunpack.c.l.bf16 %v914
        %v930 = vunpack.c.h.bf16 %v914
        %v931 = vunpack.c.l.bf16 %v916
        %v932 = vunpack.c.h.bf16 %v916
        %v933 = vunpack.c.l.bf16 %v918
        %v934 = vunpack.c.h.bf16 %v918
        %v935 = vunpack.c.l.bf16 %v920
        %v936 = vunpack.c.h.bf16 %v920
        %v937 = vunpack.c.l.bf16 %v922
        %v938 = vunpack.c.h.bf16 %v922
        %v939 = vunpack.c.l.bf16 %v924
        %v940 = vunpack.c.h.bf16 %v924
        %v941 = vmul.f32 %v845, %v925
        %v942 = vmul.f32 %v846, %v926
        %v943 = vmul.f32 %v847, %v927
        %v944 = vmul.f32 %v848, %v928
        %v945 = vmul.f32 %v849, %v929
        %v946 = vmul.f32 %v850, %v930
        %v947 = vmul.f32 %v851, %v931
        %v948 = vmul.f32 %v852, %v932
        %v949 = vmul.f32 %v853, %v933
        %v950 = vmul.f32 %v854, %v934
        %v951 = vmul.f32 %v855, %v935
        %v952 = vmul.f32 %v856, %v936
        %v953 = vmul.f32 %v857, %v937
        %v954 = vmul.f32 %v858, %v938
        %v955 = vmul.f32 %v859, %v939
        %v956 = vmul.f32 %v860, %v940
        %v957 = vld [vmem:[#allocation2] sm:$0xff]
        %v958 = vld [vmem:[#allocation2 + $0x8] sm:$0xff]
        %v959 = vld [vmem:[#allocation2 + $0x10] sm:$0xff]
        %v960 = vld [vmem:[#allocation2 + $0x18] sm:$0xff]
        %v961 = vld [vmem:[#allocation2 + $0x20] sm:$0xff]
        %v962 = vld [vmem:[#allocation2 + $0x28] sm:$0xff]
        %v963 = vld [vmem:[#allocation2 + $0x30] sm:$0xff]
        %v964 = vld [vmem:[#allocation2 + $0x38] sm:$0xff]
        %v965 = vld [vmem:[#allocation2 + $0x40] sm:$0xff]
        %v966 = vld [vmem:[#allocation2 + $0x48] sm:$0xff]
        %v967 = vld [vmem:[#allocation2 + $0x50] sm:$0xff]
        %v968 = vld [vmem:[#allocation2 + $0x58] sm:$0xff]
        %v969 = vld [vmem:[#allocation2 + $0x60] sm:$0xff]
        %v970 = vld [vmem:[#allocation2 + $0x68] sm:$0xff]
        %v971 = vld [vmem:[#allocation2 + $0x70] sm:$0xff]
        %v972 = vld [vmem:[#allocation2 + $0x78] sm:$0xff]
        %v973 = vadd.f32 %v957, %v941
        %v974 = vadd.f32 %v958, %v942
        %v975 = vadd.f32 %v959, %v943
        %v976 = vadd.f32 %v960, %v944
        %v977 = vadd.f32 %v961, %v945
        %v978 = vadd.f32 %v962, %v946
        %v979 = vadd.f32 %v963, %v947
        %v980 = vadd.f32 %v964, %v948
        %v981 = vadd.f32 %v965, %v949
        %v982 = vadd.f32 %v966, %v950
        %v983 = vadd.f32 %v967, %v951
        %v984 = vadd.f32 %v968, %v952
        %v985 = vadd.f32 %v969, %v953
        %v986 = vadd.f32 %v970, %v954
        %v987 = vadd.f32 %v971, %v955
        %v988 = vadd.f32 %v972, %v956
        %989 = vst [vmem:[#allocation2] sm:$0xff] %v973
        %990 = vst [vmem:[#allocation2 + $0x8] sm:$0xff] %v974
        %991 = vst [vmem:[#allocation2 + $0x10] sm:$0xff] %v975
        %992 = vst [vmem:[#allocation2 + $0x18] sm:$0xff] %v976
        %993 = vst [vmem:[#allocation2 + $0x20] sm:$0xff] %v977
        %994 = vst [vmem:[#allocation2 + $0x28] sm:$0xff] %v978
        %995 = vst [vmem:[#allocation2 + $0x30] sm:$0xff] %v979
        %996 = vst [vmem:[#allocation2 + $0x38] sm:$0xff] %v980
        %997 = vst [vmem:[#allocation2 + $0x40] sm:$0xff] %v981
        %998 = vst [vmem:[#allocation2 + $0x48] sm:$0xff] %v982
        %999 = vst [vmem:[#allocation2 + $0x50] sm:$0xff] %v983
        %1000 = vst [vmem:[#allocation2 + $0x58] sm:$0xff] %v984
        %1001 = vst [vmem:[#allocation2 + $0x60] sm:$0xff] %v985
        %1002 = vst [vmem:[#allocation2 + $0x68] sm:$0xff] %v986
        %1003 = vst [vmem:[#allocation2 + $0x70] sm:$0xff] %v987
        %1004 = vst [vmem:[#allocation2 + $0x78] sm:$0xff] %v988
        %p1005 = scmp.eq.s32.totalorder %s29, 1
        // Predicated region
        $region65: #{tpu_custom_call.1} parent=39 // pred_check
          %p1006 = pneg %p1005
        $region66: #{tpu_custom_call.1} parent=39 // pred_check_branch
          %1008 = sbr.rel (%p1006) target = $region68
        $region67: #{tpu_custom_call.1} parent=39 // pred_region
          %v1009 = vld [vmem:[#allocation2] sm:$0xff]
          %v1010 = vld [vmem:[#allocation2 + $0x8] sm:$0xff]
          %v1011 = vld [vmem:[#allocation2 + $0x10] sm:$0xff]
          %v1012 = vld [vmem:[#allocation2 + $0x18] sm:$0xff]
          %v1013 = vld [vmem:[#allocation2 + $0x20] sm:$0xff]
          %v1014 = vld [vmem:[#allocation2 + $0x28] sm:$0xff]
          %v1015 = vld [vmem:[#allocation2 + $0x30] sm:$0xff]
          %v1016 = vld [vmem:[#allocation2 + $0x38] sm:$0xff]
          %v1017 = vld [vmem:[#allocation2 + $0x40] sm:$0xff]
          %v1018 = vld [vmem:[#allocation2 + $0x48] sm:$0xff]
          %v1019 = vld [vmem:[#allocation2 + $0x50] sm:$0xff]
          %v1020 = vld [vmem:[#allocation2 + $0x58] sm:$0xff]
          %v1021 = vld [vmem:[#allocation2 + $0x60] sm:$0xff]
          %v1022 = vld [vmem:[#allocation2 + $0x68] sm:$0xff]
          %v1023 = vld [vmem:[#allocation2 + $0x70] sm:$0xff]
          %v1024 = vld [vmem:[#allocation2 + $0x78] sm:$0xff]
          %1025 = vadd.xlane.f32.xlu0 %v1009
          %v1026 = vpop.xlane.xlu0 %1025
          %1027 = vadd.xlane.f32.xlu0 %v1010
          %v1028 = vpop.xlane.xlu0 %1027
          %1029 = vadd.xlane.f32.xlu0 %v1011
          %v1030 = vpop.xlane.xlu0 %1029
          %1031 = vadd.xlane.f32.xlu0 %v1012
          %v1032 = vpop.xlane.xlu0 %1031
          %1033 = vadd.xlane.f32.xlu0 %v1013
          %v1034 = vpop.xlane.xlu0 %1033
          %1035 = vadd.xlane.f32.xlu0 %v1014
          %v1036 = vpop.xlane.xlu0 %1035
          %1037 = vadd.xlane.f32.xlu0 %v1015
          %v1038 = vpop.xlane.xlu0 %1037
          %1039 = vadd.xlane.f32.xlu0 %v1016
          %v1040 = vpop.xlane.xlu0 %1039
          %1041 = vadd.xlane.f32.xlu0 %v1017
          %v1042 = vpop.xlane.xlu0 %1041
          %1043 = vadd.xlane.f32.xlu0 %v1018
          %v1044 = vpop.xlane.xlu0 %1043
          %1045 = vadd.xlane.f32.xlu0 %v1019
          %v1046 = vpop.xlane.xlu0 %1045
          %1047 = vadd.xlane.f32.xlu0 %v1020
          %v1048 = vpop.xlane.xlu0 %1047
          %1049 = vadd.xlane.f32.xlu0 %v1021
          %v1050 = vpop.xlane.xlu0 %1049
          %1051 = vadd.xlane.f32.xlu0 %v1022
          %v1052 = vpop.xlane.xlu0 %1051
          %1053 = vadd.xlane.f32.xlu0 %v1023
          %v1054 = vpop.xlane.xlu0 %1053
          %1055 = vadd.xlane.f32.xlu0 %v1024
          %v1056 = vpop.xlane.xlu0 %1055
          %v1057 = vmul.f32 %v1026, 0.00390625
          %v1058 = vmul.f32 %v1028, 0.00390625
          %v1059 = vmul.f32 %v1030, 0.00390625
          %v1060 = vmul.f32 %v1032, 0.00390625
          %v1061 = vmul.f32 %v1034, 0.00390625
          %v1062 = vmul.f32 %v1036, 0.00390625
          %v1063 = vmul.f32 %v1038, 0.00390625
          %v1064 = vmul.f32 %v1040, 0.00390625
          %v1065 = vmul.f32 %v1042, 0.00390625
          %v1066 = vmul.f32 %v1044, 0.00390625
          %v1067 = vmul.f32 %v1046, 0.00390625
          %v1068 = vmul.f32 %v1048, 0.00390625
          %v1069 = vmul.f32 %v1050, 0.00390625
          %v1070 = vmul.f32 %v1052, 0.00390625
          %v1071 = vmul.f32 %v1054, 0.00390625
          %v1072 = vmul.f32 %v1056, 0.00390625
          %v1073 = vld [vmem:[#allocation9] sm:$0xff]
          %v1074 = vld [vmem:[#allocation9 + $0x8] sm:$0xff]
          %v1075 = vld [vmem:[#allocation9 + $0x10] sm:$0xff]
          %v1076 = vld [vmem:[#allocation9 + $0x18] sm:$0xff]
          %v1077 = vld [vmem:[#allocation9 + $0x20] sm:$0xff]
          %v1078 = vld [vmem:[#allocation9 + $0x28] sm:$0xff]
          %v1079 = vld [vmem:[#allocation9 + $0x30] sm:$0xff]
          %v1080 = vld [vmem:[#allocation9 + $0x38] sm:$0xff]
          %v1081 = vld [vmem:[#allocation9 + $0x40] sm:$0xff]
          %v1082 = vld [vmem:[#allocation9 + $0x48] sm:$0xff]
          %v1083 = vld [vmem:[#allocation9 + $0x50] sm:$0xff]
          %v1084 = vld [vmem:[#allocation9 + $0x58] sm:$0xff]
          %v1085 = vld [vmem:[#allocation9 + $0x60] sm:$0xff]
          %v1086 = vld [vmem:[#allocation9 + $0x68] sm:$0xff]
          %v1087 = vld [vmem:[#allocation9 + $0x70] sm:$0xff]
          %v1088 = vld [vmem:[#allocation9 + $0x78] sm:$0xff]
          %v1089 = vmul.f32 %v1057, %v1073
          %v1090 = vmul.f32 %v1058, %v1074
          %v1091 = vmul.f32 %v1059, %v1075
          %v1092 = vmul.f32 %v1060, %v1076
          %v1093 = vmul.f32 %v1061, %v1077
          %v1094 = vmul.f32 %v1062, %v1078
          %v1095 = vmul.f32 %v1063, %v1079
          %v1096 = vmul.f32 %v1064, %v1080
          %v1097 = vmul.f32 %v1065, %v1081
          %v1098 = vmul.f32 %v1066, %v1082
          %v1099 = vmul.f32 %v1067, %v1083
          %v1100 = vmul.f32 %v1068, %v1084
          %v1101 = vmul.f32 %v1069, %v1085
          %v1102 = vmul.f32 %v1070, %v1086
          %v1103 = vmul.f32 %v1071, %v1087
          %v1104 = vmul.f32 %v1072, %v1088
          %v1105 = vadd.f32 %v1089, %v1090
          %v1106 = vadd.f32 %v1105, %v1091
          %v1107 = vadd.f32 %v1106, %v1092
          %v1108 = vadd.f32 %v1107, %v1093
          %v1109 = vadd.f32 %v1108, %v1094
          %v1110 = vadd.f32 %v1109, %v1095
          %v1111 = vadd.f32 %v1110, %v1096
          %v1112 = vadd.f32 %v1111, %v1097
          %v1113 = vadd.f32 %v1112, %v1098
          %v1114 = vadd.f32 %v1113, %v1099
          %v1115 = vadd.f32 %v1114, %v1100
          %v1116 = vadd.f32 %v1115, %v1101
          %v1117 = vadd.f32 %v1116, %v1102
          %v1118 = vadd.f32 %v1117, %v1103
          %v1119 = vadd.f32 %v1118, %v1104
          %v1120 = vrot.slane %v1119, 4
          %v1121 = vadd.f32 %v1119, %v1120
          %v1122 = vrot.slane %v1121, 2
          %v1123 = vadd.f32 %v1121, %v1122
          %v1124 = vrot.slane %v1123, 1
          %v1125 = vadd.f32 %v1123, %v1124
          %v1126 = vld [vmem:[#allocation11] sm:$0x1]
          %v1127 = vadd.f32 %v1125, %v1126
          %v1128 = vmax.f32 %v1127, 0.0
          %1129 = vst [vmem:[%s310] sm:$0x1] %v1128
        $region68: #{tpu_custom_call.1} parent=39 // pred_fallthru
          _
        %s1130 = sand.u32 %s156, 1
        %s1131 = scalar_lea.sflag [#allocation5], %s1130
        %s1132 = sand.u32 %s156, 1
        %s1133 = scalar_lea.vmem [#allocation12], %s1132
        // Predicated region
        $region69: #{tpu_custom_call.1} parent=39 // pred_check
          %p1134 = pneg %p166
        $region70: #{tpu_custom_call.1} parent=39 // pred_check_branch
          %1136 = sbr.rel (%p1134) target = $region72
        $region71: #{tpu_custom_call.1} parent=39 // pred_region
          %s1138 = ssub.s32 16, 16
          %1139 = vsyncadd %s1131, %s1138
          %s1140 = smul.addr %s28, 16
          %s1141 = scalar_lea.hbm %s5, %s1140
          %s1143 = sshll.u32 %s1133, 4
          %s1144 = int_to_ptr.vmem [resolvable:$true] %s1143
          %1146 = dma.vmem_to_hbm [thread:$0]  %s1144, 16, %s1141, %s1131
        $region72: #{tpu_custom_call.1} parent=39 // pred_fallthru
          _
      $region40: #{tpu_custom_call.1} parent=5 // pred_fallthru
        _
      %p1147 = scmp.le.s32.totalorder 2, %s19
      // Predicated region
      $region73: #{tpu_custom_call.1} parent=5 // pred_check
        %p1148 = pneg %p1147
      $region74: #{tpu_custom_call.1} parent=5 // pred_check_branch
        %1150 = sbr.rel (%p1148) target = $region76
      $region75: #{tpu_custom_call.1} parent=5 // pred_region
        %s1151 = ssub.s32 %s19, 2
        // Predicated region
        $region77: #{tpu_custom_call.1} parent=75 // pred_check
          %p1152 = pneg %p172
        $region78: #{tpu_custom_call.1} parent=75 // pred_check_branch
          %1154 = sbr.rel (%p1152) target = $region80
        $region79: #{tpu_custom_call.1} parent=75 // pred_region
          %s1155 = sand.u32 %s157, 1
          %s1156 = scalar_lea.sflag [#allocation5], %s1155
          %s1157 = sand.u32 %s157, 1
          %s1158 = scalar_lea.vmem [#allocation12], %s1157
          %1159 = dma.done %s1156, 16
        $region80: #{tpu_custom_call.1} parent=75 // pred_fallthru
          _
      $region76: #{tpu_custom_call.1} parent=5 // pred_fallthru
        _
    $region6: #{tpu_custom_call.1} parent=1 // loop_footer
      %s23 = sadd.s32 1, %s19
    $region7: #{tpu_custom_call.1} parent=1 // loop_footer_branch
      %18 = sbr.rel target = $region3
    $region8: #{tpu_custom_call.1} parent=1 // loop_exit
      _
    %1160 = vsyncpa [#allocation4], 1
    %s1161 = scalar_lea.sflag [#allocation4], 1
    %1162 = vsyncpa %s1161, 1
    %1163 = vsyncpa [#allocation7], 1
    %1164 = vsyncpa [#allocation10], 1
    %1165 = vsyncpa [#allocation5], 1
    %s1166 = scalar_lea.sflag [#allocation5], 1
    %1167 = vsyncpa %s1166, 1

// kernel: tpu_custom_call.1
$region0: #{tpu_custom_call.1}
  #allocation0 [shape = 'u32[]', space=smem, size = 0x4, offset = 0x4, fixed_abs, tag = 'smem constant byte address 0x4 - core index']
  #allocation1 [shape = 'u32[144,128]{1,0:T(1,128)}', space=vmem, size = 0x12000, scoped, tag = 'internal scratch']
  #allocation2 [shape = 'f32[128,128]{1,0:T(8,128)}', space=vmem, size = 0x10000, scoped, tag = 'scratch operand']
  %s0 = inlined_call_operand.hbm [shape: f32[2,4,256], index: 0, kind: input, shape index: {}]
  %s1 = inlined_call_operand.hbm [shape: f32[128,4], index: 1, kind: input, shape index: {}]
  %s2 = inlined_call_operand.hbm [shape: f32[128,1], index: 2, kind: input, shape index: {}]
  %s3 = inlined_call_operand.hbm [shape: f32[128,128], index: 3, kind: input, shape index: {}]
  %s4 = inlined_call_operand.hbm [shape: f32[1,128], index: 4, kind: input, shape index: {}]
  %s5 = inlined_call_operand.hbm [shape: f32[2,1,128], index: 5, kind: output, shape index: {}]
  %s6 = sld [smem:[#allocation0]]
  $region81: #{tpu_custom_call.1} parent=0
    _
  %s8 = ssub.s32 1, %s6
  %s9 = scalar_select 0, %s8, %s6
  $region1: #{tpu_custom_call.1} parent=0
    #allocation3 [shape = 'u8[4096]{0}', space=vmem, size = 0x1000, scoped, tag = 'input window, operand 0']
    #allocation4 [shape = 's32[2]{0}', space=sflag, size = 0x8, scoped, tag = 'scoped memory for tpu_custom_call.1']
    #allocation5 [shape = 's32[2]{0}', space=sflag, size = 0x8, scoped, tag = 'scoped memory for tpu_custom_call.1']
    #allocation6 [shape = 'u8[65536]{0}', space=vmem, size = 0x10000, scoped, tag = 'input window, operand 1, single buffered']
    #allocation7 [shape = 's32[1]{0}', space=sflag, size = 0x4, scoped, tag = 'scoped memory for tpu_custom_call.1']
    #allocation8 [shape = 'u8[65536]{0}', space=vmem, size = 0x10000, scoped, tag = 'input window, operand 2, single buffered']
    #allocation9 [shape = 'u8[65536]{0}', space=vmem, size = 0x10000, scoped, tag = 'input window, operand 3, single buffered']
    #allocation10 [shape = 's32[1]{0}', space=sflag, size = 0x4, scoped, tag = 'scoped memory for tpu_custom_call.1']
    #allocation11 [shape = 'u8[512]{0}', space=vmem, size = 0x400, scoped, tag = 'input window, operand 4, single buffered']
    #allocation12 [shape = 'u8[1024]{0}', space=vmem, size = 0x400, scoped, tag = 'output window, operand 0']
    %10 = vsyncpa [#allocation4], 0
    %s11 = scalar_lea.sflag [#allocation4], 1
    %12 = vsyncpa %s11, 0
    %13 = vsyncpa [#allocation7], 0
    %14 = vsyncpa [#allocation10], 0
    %15 = vsyncpa [#allocation5], 0
    %s16 = scalar_lea.sflag [#allocation5], 1
    %17 = vsyncpa %s16, 0
    loop: start=0, step=1, limit=6
    $region2: #{tpu_custom_call.1} parent=1 // loop_pre_header
      _
    $region3: #{tpu_custom_call.1} parent=1 // loop_header
      %s19 = sphi 0, %s23
      %p20 = scmp.ge.s32.totalorder %s19, 6
      %s26 = sphi 0, %s38
      %s27 = sphi 0, %s34
      %s28 = sphi 0, %s26
      %s29 = sphi 0, %s27
      %s30 = sphi 0, %s28
      %s31 = sphi 0, %s29
      %s43 = sphi 0, %s45
      %s46 = sphi 0, %s43
      %s47 = sphi 0, %s46
      %s63 = sphi 0, %s47
      %s67 = sphi 0, %s67
      %s69 = sphi 0, %s67
      %s70 = sphi 0, %s69
      %s84 = sphi 0, %s70
      %s88 = sphi 0, %s88
      %s90 = sphi 0, %s88
      %s91 = sphi 0, %s90
      %s105 = sphi 0, %s91
      %s109 = sphi 0, %s109
      %s111 = sphi 0, %s109
      %s112 = sphi 0, %s111
      %s126 = sphi 0, %s112
      %s130 = sphi 0, %s130
      %s132 = sphi 0, %s130
      %s133 = sphi 0, %s132
      %s147 = sphi 0, %s133
      %s153 = sphi 0, %s155
      %s156 = sphi 0, %s153
      %s157 = sphi 0, %s156
      %s173 = sphi 0, %s157
    $region4: #{tpu_custom_call.1} parent=1 // loop_header_branch
      %22 = sbr.rel (%p20) target = $region8
    $region5: #{tpu_custom_call.1} parent=1 // loop_body
      %s24 = ssub.s32 %s19, 1
      %s25 = ssub.s32 %s19, 2
      %s32 = sadd.s32 1, %s27
      %p33 = scmp.ge.s32.totalorder %s32, 2
      %s34 = scalar_select %p33, 0, %s32
      %s35 = sadd.s32 1, %s26
      %s36 = scalar_select %p33, %s35, %s26
      %p37 = scmp.ge.s32.totalorder %s36, 2
      %s38 = scalar_select %p37, 0, %s36
      %s39 = ssub.s32 %s26, %s38
      %s40 = ssub.s32 %s27, %s34
      %s41 = sor.u32 %s39, %s40
      %p42 = scmp.eq.s32.totalorder %s41, 0
      %s44 = sadd.s32 %s43, 1
      %s45 = scalar_select %p42, %s43, %s44
      %p48 = pneg %p42
      %p49 = scmp.eq.s32.totalorder %s19, 3
      %p50 = por %p48, %p49
      %p51 = scmp.ne.s32.totalorder %s43, %s46
      %p52 = scmp.eq.s32.totalorder %s19, 0
      %p53 = por %p51, %p52
      %p54 = scmp.ne.s32.totalorder %s43, %s46
      %p55 = scmp.eq.s32.totalorder %s24, 3
      %p56 = por %p54, %p55
      %p57 = scmp.ne.s32.totalorder %s46, %s47
      %p58 = scmp.eq.s32.totalorder %s24, 0
      %p59 = por %p57, %p58
      %p60 = scmp.ne.s32.totalorder %s46, %s47
      %p61 = scmp.eq.s32.totalorder %s25, 3
      %p62 = por %p60, %p61
      %p64 = scmp.ne.s32.totalorder %s47, %s63
      %p65 = scmp.eq.s32.totalorder %s25, 0
      %p66 = por %p64, %p65
      %s68 = sadd.s32 %s67, 1
      %p71 = scmp.eq.s32.totalorder %s19, 3
      %p72 = scmp.ne.s32.totalorder %s67, %s69
      %p73 = scmp.eq.s32.totalorder %s19, 0
      %p74 = por %p72, %p73
      %p75 = scmp.ne.s32.totalorder %s67, %s69
      %p76 = scmp.eq.s32.totalorder %s24, 3
      %p77 = por %p75, %p76
      %p78 = scmp.ne.s32.totalorder %s69, %s70
      %p79 = scmp.eq.s32.totalorder %s24, 0
      %p80 = por %p78, %p79
      %p81 = scmp.ne.s32.totalorder %s69, %s70
      %p82 = scmp.eq.s32.totalorder %s25, 3
      %p83 = por %p81, %p82
      %p85 = scmp.ne.s32.totalorder %s70, %s84
      %p86 = scmp.eq.s32.totalorder %s25, 0
      %p87 = por %p85, %p86
      %s89 = sadd.s32 %s88, 1
      %p92 = scmp.eq.s32.totalorder %s19, 3
      %p93 = scmp.ne.s32.totalorder %s88, %s90
      %p94 = scmp.eq.s32.totalorder %s19, 0
      %p95 = por %p93, %p94
      %p96 = scmp.ne.s32.totalorder %s88, %s90
      %p97 = scmp.eq.s32.totalorder %s24, 3
      %p98 = por %p96, %p97
      %p99 = scmp.ne.s32.totalorder %s90, %s91
      %p100 = scmp.eq.s32.totalorder %s24, 0
      %p101 = por %p99, %p100
      %p102 = scmp.ne.s32.totalorder %s90, %s91
      %p103 = scmp.eq.s32.totalorder %s25, 3
      %p104 = por %p102, %p103
      %p106 = scmp.ne.s32.totalorder %s91, %s105
      %p107 = scmp.eq.s32.totalorder %s25, 0
      %p108 = por %p106, %p107
      %s110 = sadd.s32 %s109, 1
      %p113 = scmp.eq.s32.totalorder %s19, 3
      %p114 = scmp.ne.s32.totalorder %s109, %s111
      %p115 = scmp.eq.s32.totalorder %s19, 0
      %p116 = por %p114, %p115
      %p117 = scmp.ne.s32.totalorder %s109, %s111
      %p118 = scmp.eq.s32.totalorder %s24, 3
      %p119 = por %p117, %p118
      %p120 = scmp.ne.s32.totalorder %s111, %s112
      %p121 = scmp.eq.s32.totalorder %s24, 0
      %p122 = por %p120, %p121
      %p123 = scmp.ne.s32.totalorder %s111, %s112
      %p124 = scmp.eq.s32.totalorder %s25, 3
      %p125 = por %p123, %p124
      %p127 = scmp.ne.s32.totalorder %s112, %s126
      %p128 = scmp.eq.s32.totalorder %s25, 0
      %p129 = por %p127, %p128
      %s131 = sadd.s32 %s130, 1
      %p134 = scmp.eq.s32.totalorder %s19, 3
      %p135 = scmp.ne.s32.totalorder %s130, %s132
      %p136 = scmp.eq.s32.totalorder %s19, 0
      %p137 = por %p135, %p136
      %p138 = scmp.ne.s32.totalorder %s130, %s132
      %p139 = scmp.eq.s32.totalorder %s24, 3
      %p140 = por %p138, %p139
      %p141 = scmp.ne.s32.totalorder %s132, %s133
      %p142 = scmp.eq.s32.totalorder %s24, 0
      %p143 = por %p141, %p142
      %p144 = scmp.ne.s32.totalorder %s132, %s133
      %p145 = scmp.eq.s32.totalorder %s25, 3
      %p146 = por %p144, %p145
      %p148 = scmp.ne.s32.totalorder %s133, %s147
      %p149 = scmp.eq.s32.totalorder %s25, 0
      %p150 = por %p148, %p149
      %s151 = ssub.s32 %s26, %s38
      %p152 = scmp.eq.s32.totalorder %s151, 0
      %s154 = sadd.s32 %s153, 1
      %s155 = scalar_select %p152, %s153, %s154
      %p158 = pneg %p152
      %p159 = scmp.eq.s32.totalorder %s19, 3
      %p160 = por %p158, %p159
      %p161 = scmp.ne.s32.totalorder %s153, %s156
      %p162 = scmp.eq.s32.totalorder %s19, 0
      %p163 = por %p161, %p162
      %p164 = scmp.ne.s32.totalorder %s153, %s156
      %p165 = scmp.eq.s32.totalorder %s24, 3
      %p166 = por %p164, %p165
      %p167 = scmp.ne.s32.totalorder %s156, %s157
      %p168 = scmp.eq.s32.totalorder %s24, 0
      %p169 = por %p167, %p168
      %p170 = scmp.ne.s32.totalorder %s156, %s157
      %p171 = scmp.eq.s32.totalorder %s25, 3
      %p172 = por %p170, %p171
      %p174 = scmp.ne.s32.totalorder %s157, %s173
      %p175 = scmp.eq.s32.totalorder %s25, 0
      %p176 = por %p174, %p175
      %p177 = scmp.le.s32.totalorder 1, %s19
      %p178 = scmp.lt.s32.totalorder %s19, 5
      %p179 = pnand %p177, %p178
      %p180 = pneg %p179
      // Predicated region
      $region9: #{tpu_custom_call.1} parent=5 // pred_check
        _
      $region10: #{tpu_custom_call.1} parent=5 // pred_check_branch
        %182 = sbr.rel (%p179) target = $region12
      $region11: #{tpu_custom_call.1} parent=5 // pred_region
        %s183 = ssub.s32 %s19, 1
        // Predicated region
        $region13: #{tpu_custom_call.1} parent=11 // pred_check
          %p184 = pneg %p80
        $region14: #{tpu_custom_call.1} parent=11 // pred_check_branch
          %186 = sbr.rel (%p184) target = $region16
        $region15: #{tpu_custom_call.1} parent=11 // pred_region
          %s188 = ssub.s32 2048, 2048
          %189 = vsyncadd [#allocation7], %s188
          %s190 = sshll.u32 [#allocation6], 4
          %s191 = int_to_ptr.vmem [resolvable:$true] %s190
          %196 = dma.hbm_to_vmem [thread:$0]  %s1, 2048, %s191, [#allocation7], 128, 128, 8
        $region16: #{tpu_custom_call.1} parent=11 // pred_fallthru
          _
        // Predicated region
        $region17: #{tpu_custom_call.1} parent=11 // pred_check
          %p197 = pneg %p101
        $region18: #{tpu_custom_call.1} parent=11 // pred_check_branch
          %199 = sbr.rel (%p197) target = $region20
        $region19: #{tpu_custom_call.1} parent=11 // pred_region
          %s201 = ssub.s32 2048, 2048
          %202 = vsyncadd [#allocation7], %s201
          %s203 = sshll.u32 [#allocation8], 4
          %s204 = int_to_ptr.vmem [resolvable:$true] %s203
          %209 = dma.hbm_to_vmem [thread:$0]  %s2, 2048, %s204, [#allocation7], 128, 128, 8
        $region20: #{tpu_custom_call.1} parent=11 // pred_fallthru
          _
        // Predicated region
        $region21: #{tpu_custom_call.1} parent=11 // pred_check
          %p210 = pneg %p122
        $region22: #{tpu_custom_call.1} parent=11 // pred_check_branch
          %212 = sbr.rel (%p210) target = $region24
        $region23: #{tpu_custom_call.1} parent=11 // pred_region
          %s214 = ssub.s32 2048, 2048
          %215 = vsyncadd [#allocation10], %s214
          %s216 = sshll.u32 [#allocation9], 4
          %s217 = int_to_ptr.vmem [resolvable:$true] %s216
          %222 = dma.hbm_to_vmem [thread:$0]  %s3, 2048, %s217, [#allocation10], 128, 128, 8
        $region24: #{tpu_custom_call.1} parent=11 // pred_fallthru
          _
        // Predicated region
        $region25: #{tpu_custom_call.1} parent=11 // pred_check
          %p223 = pneg %p143
        $region26: #{tpu_custom_call.1} parent=11 // pred_check_branch
          %225 = sbr.rel (%p223) target = $region28
        $region27: #{tpu_custom_call.1} parent=11 // pred_region
          %s227 = ssub.s32 16, 16
          %228 = vsyncadd [#allocation10], %s227
          %s230 = sshll.u32 [#allocation11], 4
          %s231 = int_to_ptr.vmem [resolvable:$true] %s230
          %233 = dma.hbm_to_vmem [thread:$0]  %s4, 16, %s231, [#allocation10]
        $region28: #{tpu_custom_call.1} parent=11 // pred_fallthru
          _
      $region12: #{tpu_custom_call.1} parent=5 // pred_fallthru
        _
      %p234 = scmp.lt.s32.totalorder %s19, 4
      // Predicated region
      $region29: #{tpu_custom_call.1} parent=5 // pred_check
        %p235 = pneg %p234
      $region30: #{tpu_custom_call.1} parent=5 // pred_check_branch
        %237 = sbr.rel (%p235) target = $region32
      $region31: #{tpu_custom_call.1} parent=5 // pred_region
        // Predicated region
        $region33: #{tpu_custom_call.1} parent=31 // pred_check
          %p238 = pneg %p53
        $region34: #{tpu_custom_call.1} parent=31 // pred_check_branch
          %240 = sbr.rel (%p238) target = $region36
        $region35: #{tpu_custom_call.1} parent=31 // pred_region
          %s241 = sand.u32 %s43, 1
          %s242 = scalar_lea.sflag [#allocation4], %s241
          %s243 = sand.u32 %s43, 1
          %s244 = smul.addr %s243, 4
          %s245 = scalar_lea.vmem [#allocation3], %s244
          %s247 = ssub.s32 64, 64
          %248 = vsyncadd %s242, %s247
          %s249 = smul.addr %s26, 2
          %s250 = sadd.s32 %s27, %s249
          %s251 = smul.addr %s250, 64
          %s252 = scalar_lea.hbm %s0, %s251
          %s254 = sshll.u32 %s245, 4
          %s255 = int_to_ptr.vmem [resolvable:$true] %s254
          %257 = dma.hbm_to_vmem [thread:$0]  %s252, 64, %s255, %s242
        $region36: #{tpu_custom_call.1} parent=31 // pred_fallthru
          _
      $region32: #{tpu_custom_call.1} parent=5 // pred_fallthru
        _
      %p258 = scmp.le.s32.totalorder 1, %s19
      %p259 = scmp.lt.s32.totalorder %s19, 5
      %p260 = pnand %p258, %p259
      %p261 = pneg %p260
      // Predicated region
      $region37: #{tpu_custom_call.1} parent=5 // pred_check
        _
      $region38: #{tpu_custom_call.1} parent=5 // pred_check_branch
        %263 = sbr.rel (%p260) target = $region40
      $region39: #{tpu_custom_call.1} parent=5 // pred_region
        %s264 = ssub.s32 %s19, 1
        %s265 = sand.u32 %s46, 1
        %s266 = scalar_lea.sflag [#allocation4], %s265
        %s267 = sand.u32 %s46, 1
        %s268 = smul.addr %s267, 4
        %s269 = scalar_lea.vmem [#allocation3], %s268
        // Predicated region
        $region41: #{tpu_custom_call.1} parent=39 // pred_check
          %p270 = pneg %p59
        $region42: #{tpu_custom_call.1} parent=39 // pred_check_branch
          %272 = sbr.rel (%p270) target = $region44
        $region43: #{tpu_custom_call.1} parent=39 // pred_region
          %273 = dma.done %s266, 64
        $region44: #{tpu_custom_call.1} parent=39 // pred_fallthru
          _
        // Predicated region
        $region45: #{tpu_custom_call.1} parent=39 // pred_check
          %p274 = pneg %p80
        $region46: #{tpu_custom_call.1} parent=39 // pred_check_branch
          %276 = sbr.rel (%p274) target = $region48
        $region47: #{tpu_custom_call.1} parent=39 // pred_region
          %277 = dma.done [#allocation7], 2048
        $region48: #{tpu_custom_call.1} parent=39 // pred_fallthru
          _
        // Predicated region
        $region49: #{tpu_custom_call.1} parent=39 // pred_check
          %p278 = pneg %p101
        $region50: #{tpu_custom_call.1} parent=39 // pred_check_branch
          %280 = sbr.rel (%p278) target = $region52
        $region51: #{tpu_custom_call.1} parent=39 // pred_region
          %281 = dma.done [#allocation7], 2048
        $region52: #{tpu_custom_call.1} parent=39 // pred_fallthru
          _
        // Predicated region
        $region53: #{tpu_custom_call.1} parent=39 // pred_check
          %p282 = pneg %p122
        $region54: #{tpu_custom_call.1} parent=39 // pred_check_branch
          %284 = sbr.rel (%p282) target = $region56
        $region55: #{tpu_custom_call.1} parent=39 // pred_region
          %285 = dma.done [#allocation10], 2048
        $region56: #{tpu_custom_call.1} parent=39 // pred_fallthru
          _
        // Predicated region
        $region57: #{tpu_custom_call.1} parent=39 // pred_check
          %p286 = pneg %p143
        $region58: #{tpu_custom_call.1} parent=39 // pred_check_branch
          %288 = sbr.rel (%p286) target = $region60
        $region59: #{tpu_custom_call.1} parent=39 // pred_region
          %289 = dma.done [#allocation10], 16
        $region60: #{tpu_custom_call.1} parent=39 // pred_fallthru
          _
        %s290 = sand.u32 %s46, 1
        %s291 = scalar_lea.sflag [#allocation4], %s290
        %s292 = sand.u32 %s46, 1
        %s293 = smul.addr %s292, 4
        %s294 = scalar_lea.vmem [#allocation3], %s293
        %p295 = pneg %p59
        %p296 = pneg %p56
        %p297 = pneg %p80
        %p298 = pneg %p77
        %p299 = pneg %p101
        %p300 = pneg %p98
        %p301 = pneg %p122
        %p302 = pneg %p119
        %p303 = pneg %p143
        %p304 = pneg %p140
        %p305 = pneg %p169
        %p306 = pneg %p166
        %s307 = sand.u32 %s156, 1
        %s308 = scalar_lea.sflag [#allocation5], %s307
        %s309 = sand.u32 %s156, 1
        %s310 = scalar_lea.vmem [#allocation12], %s309
        %p311 = scmp.eq.s32.totalorder %s29, 0
        // Predicated region
        $region61: #{tpu_custom_call.1} parent=39 // pred_check
          %p312 = pneg %p311
        $region62: #{tpu_custom_call.1} parent=39 // pred_check_branch
          %314 = sbr.rel (%p312) target = $region64
        $region63: #{tpu_custom_call.1} parent=39 // pred_region
          %315 = vst [vmem:[#allocation2] sm:$0xff] 0.0
          %316 = vst [vmem:[#allocation2 + $0x8] sm:$0xff] 0.0
          %317 = vst [vmem:[#allocation2 + $0x10] sm:$0xff] 0.0
          %318 = vst [vmem:[#allocation2 + $0x18] sm:$0xff] 0.0
          %319 = vst [vmem:[#allocation2 + $0x20] sm:$0xff] 0.0
          %320 = vst [vmem:[#allocation2 + $0x28] sm:$0xff] 0.0
          %321 = vst [vmem:[#allocation2 + $0x30] sm:$0xff] 0.0
          %322 = vst [vmem:[#allocation2 + $0x38] sm:$0xff] 0.0
          %323 = vst [vmem:[#allocation2 + $0x40] sm:$0xff] 0.0
          %324 = vst [vmem:[#allocation2 + $0x48] sm:$0xff] 0.0
          %325 = vst [vmem:[#allocation2 + $0x50] sm:$0xff] 0.0
          %326 = vst [vmem:[#allocation2 + $0x58] sm:$0xff] 0.0
          %327 = vst [vmem:[#allocation2 + $0x60] sm:$0xff] 0.0
          %328 = vst [vmem:[#allocation2 + $0x68] sm:$0xff] 0.0
          %329 = vst [vmem:[#allocation2 + $0x70] sm:$0xff] 0.0
          %330 = vst [vmem:[#allocation2 + $0x78] sm:$0xff] 0.0
        $region64: #{tpu_custom_call.1} parent=39 // pred_fallthru
          _
        %v331 = vld [vmem:[%s269] sm:$0xf]
        %v332 = vld [vmem:[#allocation6] sm:$0xff]
        %v333 = vld [vmem:[#allocation6 + $0x8] sm:$0xff]
        %v334 = vld [vmem:[#allocation6 + $0x10] sm:$0xff]
        %v335 = vld [vmem:[#allocation6 + $0x18] sm:$0xff]
        %v336 = vld [vmem:[#allocation6 + $0x20] sm:$0xff]
        %v337 = vld [vmem:[#allocation6 + $0x28] sm:$0xff]
        %v338 = vld [vmem:[#allocation6 + $0x30] sm:$0xff]
        %v339 = vld [vmem:[#allocation6 + $0x38] sm:$0xff]
        %v340 = vld [vmem:[#allocation6 + $0x40] sm:$0xff]
        %v341 = vld [vmem:[#allocation6 + $0x48] sm:$0xff]
        %v342 = vld [vmem:[#allocation6 + $0x50] sm:$0xff]
        %v343 = vld [vmem:[#allocation6 + $0x58] sm:$0xff]
        %v344 = vld [vmem:[#allocation6 + $0x60] sm:$0xff]
        %v345 = vld [vmem:[#allocation6 + $0x68] sm:$0xff]
        %v346 = vld [vmem:[#allocation6 + $0x70] sm:$0xff]
        %v347 = vld [vmem:[#allocation6 + $0x78] sm:$0xff]
        %349 = vset.pattern.permute.xlu0 0
        %350 = vperm.xlu0 %349, %v332
        %v351 = vpop.permute.xlu0 %350
        %354 = vset.pattern.permute.xlu0 0
        %355 = vperm.xlu0 %354, %v333
        %v356 = vpop.permute.xlu0 %355
        %359 = vset.pattern.permute.xlu0 0
        %360 = vperm.xlu0 %359, %v334
        %v361 = vpop.permute.xlu0 %360
        %364 = vset.pattern.permute.xlu0 0
        %365 = vperm.xlu0 %364, %v335
        %v366 = vpop.permute.xlu0 %365
        %369 = vset.pattern.permute.xlu0 0
        %370 = vperm.xlu0 %369, %v336
        %v371 = vpop.permute.xlu0 %370
        %374 = vset.pattern.permute.xlu0 0
        %375 = vperm.xlu0 %374, %v337
        %v376 = vpop.permute.xlu0 %375
        %379 = vset.pattern.permute.xlu0 0
        %380 = vperm.xlu0 %379, %v338
        %v381 = vpop.permute.xlu0 %380
        %384 = vset.pattern.permute.xlu0 0
        %385 = vperm.xlu0 %384, %v339
        %v386 = vpop.permute.xlu0 %385
        %389 = vset.pattern.permute.xlu0 0
        %390 = vperm.xlu0 %389, %v340
        %v391 = vpop.permute.xlu0 %390
        %394 = vset.pattern.permute.xlu0 0
        %395 = vperm.xlu0 %394, %v341
        %v396 = vpop.permute.xlu0 %395
        %399 = vset.pattern.permute.xlu0 0
        %400 = vperm.xlu0 %399, %v342
        %v401 = vpop.permute.xlu0 %400
        %404 = vset.pattern.permute.xlu0 0
        %405 = vperm.xlu0 %404, %v343
        %v406 = vpop.permute.xlu0 %405
        %409 = vset.pattern.permute.xlu0 0
        %410 = vperm.xlu0 %409, %v344
        %v411 = vpop.permute.xlu0 %410
        %414 = vset.pattern.permute.xlu0 0
        %415 = vperm.xlu0 %414, %v345
        %v416 = vpop.permute.xlu0 %415
        %419 = vset.pattern.permute.xlu0 0
        %420 = vperm.xlu0 %419, %v346
        %v421 = vpop.permute.xlu0 %420
        %424 = vset.pattern.permute.xlu0 0
        %425 = vperm.xlu0 %424, %v347
        %v426 = vpop.permute.xlu0 %425
        %v428 = vlaneseq
        %v429 = vshrl.u32 %v428, 7
        %v430 = vsub.s32 0, %v429
        %v431 = vrot.slane %v331, %v430
        %v432 = vmul.f32 %v351, %v431
        %v433 = vmul.f32 %v356, %v431
        %v434 = vmul.f32 %v361, %v431
        %v435 = vmul.f32 %v366, %v431
        %v436 = vmul.f32 %v371, %v431
        %v437 = vmul.f32 %v376, %v431
        %v438 = vmul.f32 %v381, %v431
        %v439 = vmul.f32 %v386, %v431
        %v440 = vmul.f32 %v391, %v431
        %v441 = vmul.f32 %v396, %v431
        %v442 = vmul.f32 %v401, %v431
        %v443 = vmul.f32 %v406, %v431
        %v444 = vmul.f32 %v411, %v431
        %v445 = vmul.f32 %v416, %v431
        %v446 = vmul.f32 %v421, %v431
        %v447 = vmul.f32 %v426, %v431
        %448 = vset.pattern.permute.xlu0 1
        %449 = vperm.xlu0 %448, %v332
        %v450 = vpop.permute.xlu0 %449
        %452 = vset.pattern.permute.xlu0 1
        %453 = vperm.xlu0 %452, %v333
        %v454 = vpop.permute.xlu0 %453
        %456 = vset.pattern.permute.xlu0 1
        %457 = vperm.xlu0 %456, %v334
        %v458 = vpop.permute.xlu0 %457
        %460 = vset.pattern.permute.xlu0 1
        %461 = vperm.xlu0 %460, %v335
        %v462 = vpop.permute.xlu0 %461
        %464 = vset.pattern.permute.xlu0 1
        %465 = vperm.xlu0 %464, %v336
        %v466 = vpop.permute.xlu0 %465
        %468 = vset.pattern.permute.xlu0 1
        %469 = vperm.xlu0 %468, %v337
        %v470 = vpop.permute.xlu0 %469
        %472 = vset.pattern.permute.xlu0 1
        %473 = vperm.xlu0 %472, %v338
        %v474 = vpop.permute.xlu0 %473
        %476 = vset.pattern.permute.xlu0 1
        %477 = vperm.xlu0 %476, %v339
        %v478 = vpop.permute.xlu0 %477
        %480 = vset.pattern.permute.xlu0 1
        %481 = vperm.xlu0 %480, %v340
        %v482 = vpop.permute.xlu0 %481
        %484 = vset.pattern.permute.xlu0 1
        %485 = vperm.xlu0 %484, %v341
        %v486 = vpop.permute.xlu0 %485
        %488 = vset.pattern.permute.xlu0 1
        %489 = vperm.xlu0 %488, %v342
        %v490 = vpop.permute.xlu0 %489
        %492 = vset.pattern.permute.xlu0 1
        %493 = vperm.xlu0 %492, %v343
        %v494 = vpop.permute.xlu0 %493
        %496 = vset.pattern.permute.xlu0 1
        %497 = vperm.xlu0 %496, %v344
        %v498 = vpop.permute.xlu0 %497
        %500 = vset.pattern.permute.xlu0 1
        %501 = vperm.xlu0 %500, %v345
        %v502 = vpop.permute.xlu0 %501
        %504 = vset.pattern.permute.xlu0 1
        %505 = vperm.xlu0 %504, %v346
        %v506 = vpop.permute.xlu0 %505
        %508 = vset.pattern.permute.xlu0 1
        %509 = vperm.xlu0 %508, %v347
        %v510 = vpop.permute.xlu0 %509
        %v512 = vlaneseq
        %v513 = vshrl.u32 %v512, 7
        %v514 = vsub.s32 1, %v513
        %v515 = vrot.slane %v331, %v514
        %v516 = vmul.f32 %v450, %v515
        %v517 = vmul.f32 %v454, %v515
        %v518 = vmul.f32 %v458, %v515
        %v519 = vmul.f32 %v462, %v515
        %v520 = vmul.f32 %v466, %v515
        %v521 = vmul.f32 %v470, %v515
        %v522 = vmul.f32 %v474, %v515
        %v523 = vmul.f32 %v478, %v515
        %v524 = vmul.f32 %v482, %v515
        %v525 = vmul.f32 %v486, %v515
        %v526 = vmul.f32 %v490, %v515
        %v527 = vmul.f32 %v494, %v515
        %v528 = vmul.f32 %v498, %v515
        %v529 = vmul.f32 %v502, %v515
        %v530 = vmul.f32 %v506, %v515
        %v531 = vmul.f32 %v510, %v515
        %v532 = vadd.f32 %v432, %v516
        %v533 = vadd.f32 %v433, %v517
        %v534 = vadd.f32 %v434, %v518
        %v535 = vadd.f32 %v435, %v519
        %v536 = vadd.f32 %v436, %v520
        %v537 = vadd.f32 %v437, %v521
        %v538 = vadd.f32 %v438, %v522
        %v539 = vadd.f32 %v439, %v523
        %v540 = vadd.f32 %v440, %v524
        %v541 = vadd.f32 %v441, %v525
        %v542 = vadd.f32 %v442, %v526
        %v543 = vadd.f32 %v443, %v527
        %v544 = vadd.f32 %v444, %v528
        %v545 = vadd.f32 %v445, %v529
        %v546 = vadd.f32 %v446, %v530
        %v547 = vadd.f32 %v447, %v531
        %548 = vset.pattern.permute.xlu0 2
        %549 = vperm.xlu0 %548, %v332
        %v550 = vpop.permute.xlu0 %549
        %552 = vset.pattern.permute.xlu0 2
        %553 = vperm.xlu0 %552, %v333
        %v554 = vpop.permute.xlu0 %553
        %556 = vset.pattern.permute.xlu0 2
        %557 = vperm.xlu0 %556, %v334
        %v558 = vpop.permute.xlu0 %557
        %560 = vset.pattern.permute.xlu0 2
        %561 = vperm.xlu0 %560, %v335
        %v562 = vpop.permute.xlu0 %561
        %564 = vset.pattern.permute.xlu0 2
        %565 = vperm.xlu0 %564, %v336
        %v566 = vpop.permute.xlu0 %565
        %568 = vset.pattern.permute.xlu0 2
        %569 = vperm.xlu0 %568, %v337
        %v570 = vpop.permute.xlu0 %569
        %572 = vset.pattern.permute.xlu0 2
        %573 = vperm.xlu0 %572, %v338
        %v574 = vpop.permute.xlu0 %573
        %576 = vset.pattern.permute.xlu0 2
        %577 = vperm.xlu0 %576, %v339
        %v578 = vpop.permute.xlu0 %577
        %580 = vset.pattern.permute.xlu0 2
        %581 = vperm.xlu0 %580, %v340
        %v582 = vpop.permute.xlu0 %581
        %584 = vset.pattern.permute.xlu0 2
        %585 = vperm.xlu0 %584, %v341
        %v586 = vpop.permute.xlu0 %585
        %588 = vset.pattern.permute.xlu0 2
        %589 = vperm.xlu0 %588, %v342
        %v590 = vpop.permute.xlu0 %589
        %592 = vset.pattern.permute.xlu0 2
        %593 = vperm.xlu0 %592, %v343
        %v594 = vpop.permute.xlu0 %593
        %596 = vset.pattern.permute.xlu0 2
        %597 = vperm.xlu0 %596, %v344
        %v598 = vpop.permute.xlu0 %597
        %600 = vset.pattern.permute.xlu0 2
        %601 = vperm.xlu0 %600, %v345
        %v602 = vpop.permute.xlu0 %601
        %604 = vset.pattern.permute.xlu0 2
        %605 = vperm.xlu0 %604, %v346
        %v606 = vpop.permute.xlu0 %605
        %608 = vset.pattern.permute.xlu0 2
        %609 = vperm.xlu0 %608, %v347
        %v610 = vpop.permute.xlu0 %609
        %v612 = vlaneseq
        %v613 = vshrl.u32 %v612, 7
        %v614 = vsub.s32 2, %v613
        %v615 = vrot.slane %v331, %v614
        %v616 = vmul.f32 %v550, %v615
        %v617 = vmul.f32 %v554, %v615
        %v618 = vmul.f32 %v558, %v615
        %v619 = vmul.f32 %v562, %v615
        %v620 = vmul.f32 %v566, %v615
        %v621 = vmul.f32 %v570, %v615
        %v622 = vmul.f32 %v574, %v615
        %v623 = vmul.f32 %v578, %v615
        %v624 = vmul.f32 %v582, %v615
        %v625 = vmul.f32 %v586, %v615
        %v626 = vmul.f32 %v590, %v615
        %v627 = vmul.f32 %v594, %v615
        %v628 = vmul.f32 %v598, %v615
        %v629 = vmul.f32 %v602, %v615
        %v630 = vmul.f32 %v606, %v615
        %v631 = vmul.f32 %v610, %v615
        %v632 = vadd.f32 %v532, %v616
        %v633 = vadd.f32 %v533, %v617
        %v634 = vadd.f32 %v534, %v618
        %v635 = vadd.f32 %v535, %v619
        %v636 = vadd.f32 %v536, %v620
        %v637 = vadd.f32 %v537, %v621
        %v638 = vadd.f32 %v538, %v622
        %v639 = vadd.f32 %v539, %v623
        %v640 = vadd.f32 %v540, %v624
        %v641 = vadd.f32 %v541, %v625
        %v642 = vadd.f32 %v542, %v626
        %v643 = vadd.f32 %v543, %v627
        %v644 = vadd.f32 %v544, %v628
        %v645 = vadd.f32 %v545, %v629
        %v646 = vadd.f32 %v546, %v630
        %v647 = vadd.f32 %v547, %v631
        %648 = vset.pattern.permute.xlu0 3
        %649 = vperm.xlu0 %648, %v332
        %v650 = vpop.permute.xlu0 %649
        %652 = vset.pattern.permute.xlu0 3
        %653 = vperm.xlu0 %652, %v333
        %v654 = vpop.permute.xlu0 %653
        %656 = vset.pattern.permute.xlu0 3
        %657 = vperm.xlu0 %656, %v334
        %v658 = vpop.permute.xlu0 %657
        %660 = vset.pattern.permute.xlu0 3
        %661 = vperm.xlu0 %660, %v335
        %v662 = vpop.permute.xlu0 %661
        %664 = vset.pattern.permute.xlu0 3
        %665 = vperm.xlu0 %664, %v336
        %v666 = vpop.permute.xlu0 %665
        %668 = vset.pattern.permute.xlu0 3
        %669 = vperm.xlu0 %668, %v337
        %v670 = vpop.permute.xlu0 %669
        %672 = vset.pattern.permute.xlu0 3
        %673 = vperm.xlu0 %672, %v338
        %v674 = vpop.permute.xlu0 %673
        %676 = vset.pattern.permute.xlu0 3
        %677 = vperm.xlu0 %676, %v339
        %v678 = vpop.permute.xlu0 %677
        %680 = vset.pattern.permute.xlu0 3
        %681 = vperm.xlu0 %680, %v340
        %v682 = vpop.permute.xlu0 %681
        %684 = vset.pattern.permute.xlu0 3
        %685 = vperm.xlu0 %684, %v341
        %v686 = vpop.permute.xlu0 %685
        %688 = vset.pattern.permute.xlu0 3
        %689 = vperm.xlu0 %688, %v342
        %v690 = vpop.permute.xlu0 %689
        %692 = vset.pattern.permute.xlu0 3
        %693 = vperm.xlu0 %692, %v343
        %v694 = vpop.permute.xlu0 %693
        %696 = vset.pattern.permute.xlu0 3
        %697 = vperm.xlu0 %696, %v344
        %v698 = vpop.permute.xlu0 %697
        %700 = vset.pattern.permute.xlu0 3
        %701 = vperm.xlu0 %700, %v345
        %v702 = vpop.permute.xlu0 %701
        %704 = vset.pattern.permute.xlu0 3
        %705 = vperm.xlu0 %704, %v346
        %v706 = vpop.permute.xlu0 %705
        %708 = vset.pattern.permute.xlu0 3
        %709 = vperm.xlu0 %708, %v347
        %v710 = vpop.permute.xlu0 %709
        %v712 = vlaneseq
        %v713 = vshrl.u32 %v712, 7
        %v714 = vsub.s32 3, %v713
        %v715 = vrot.slane %v331, %v714
        %v716 = vmul.f32 %v650, %v715
        %v717 = vmul.f32 %v654, %v715
        %v718 = vmul.f32 %v658, %v715
        %v719 = vmul.f32 %v662, %v715
        %v720 = vmul.f32 %v666, %v715
        %v721 = vmul.f32 %v670, %v715
        %v722 = vmul.f32 %v674, %v715
        %v723 = vmul.f32 %v678, %v715
        %v724 = vmul.f32 %v682, %v715
        %v725 = vmul.f32 %v686, %v715
        %v726 = vmul.f32 %v690, %v715
        %v727 = vmul.f32 %v694, %v715
        %v728 = vmul.f32 %v698, %v715
        %v729 = vmul.f32 %v702, %v715
        %v730 = vmul.f32 %v706, %v715
        %v731 = vmul.f32 %v710, %v715
        %v732 = vadd.f32 %v632, %v716
        %v733 = vadd.f32 %v633, %v717
        %v734 = vadd.f32 %v634, %v718
        %v735 = vadd.f32 %v635, %v719
        %v736 = vadd.f32 %v636, %v720
        %v737 = vadd.f32 %v637, %v721
        %v738 = vadd.f32 %v638, %v722
        %v739 = vadd.f32 %v639, %v723
        %v740 = vadd.f32 %v640, %v724
        %v741 = vadd.f32 %v641, %v725
        %v742 = vadd.f32 %v642, %v726
        %v743 = vadd.f32 %v643, %v727
        %v744 = vadd.f32 %v644, %v728
        %v745 = vadd.f32 %v645, %v729
        %v746 = vadd.f32 %v646, %v730
        %v747 = vadd.f32 %v647, %v731
        %v748 = vld [vmem:[#allocation8] sm:$0xff]
        %v749 = vld [vmem:[#allocation8 + $0x8] sm:$0xff]
        %v750 = vld [vmem:[#allocation8 + $0x10] sm:$0xff]
        %v751 = vld [vmem:[#allocation8 + $0x18] sm:$0xff]
        %v752 = vld [vmem:[#allocation8 + $0x20] sm:$0xff]
        %v753 = vld [vmem:[#allocation8 + $0x28] sm:$0xff]
        %v754 = vld [vmem:[#allocation8 + $0x30] sm:$0xff]
        %v755 = vld [vmem:[#allocation8 + $0x38] sm:$0xff]
        %v756 = vld [vmem:[#allocation8 + $0x40] sm:$0xff]
        %v757 = vld [vmem:[#allocation8 + $0x48] sm:$0xff]
        %v758 = vld [vmem:[#allocation8 + $0x50] sm:$0xff]
        %v759 = vld [vmem:[#allocation8 + $0x58] sm:$0xff]
        %v760 = vld [vmem:[#allocation8 + $0x60] sm:$0xff]
        %v761 = vld [vmem:[#allocation8 + $0x68] sm:$0xff]
        %v762 = vld [vmem:[#allocation8 + $0x70] sm:$0xff]
        %v763 = vld [vmem:[#allocation8 + $0x78] sm:$0xff]
        %765 = vset.pattern.permute.xlu0 0
        %766 = vperm.xlu0 %765, %v748
        %v767 = vpop.permute.xlu0 %766
        %770 = vset.pattern.permute.xlu0 0
        %771 = vperm.xlu0 %770, %v749
        %v772 = vpop.permute.xlu0 %771
        %775 = vset.pattern.permute.xlu0 0
        %776 = vperm.xlu0 %775, %v750
        %v777 = vpop.permute.xlu0 %776
        %780 = vset.pattern.permute.xlu0 0
        %781 = vperm.xlu0 %780, %v751
        %v782 = vpop.permute.xlu0 %781
        %785 = vset.pattern.permute.xlu0 0
        %786 = vperm.xlu0 %785, %v752
        %v787 = vpop.permute.xlu0 %786
        %790 = vset.pattern.permute.xlu0 0
        %791 = vperm.xlu0 %790, %v753
        %v792 = vpop.permute.xlu0 %791
        %795 = vset.pattern.permute.xlu0 0
        %796 = vperm.xlu0 %795, %v754
        %v797 = vpop.permute.xlu0 %796
        %800 = vset.pattern.permute.xlu0 0
        %801 = vperm.xlu0 %800, %v755
        %v802 = vpop.permute.xlu0 %801
        %805 = vset.pattern.permute.xlu0 0
        %806 = vperm.xlu0 %805, %v756
        %v807 = vpop.permute.xlu0 %806
        %810 = vset.pattern.permute.xlu0 0
        %811 = vperm.xlu0 %810, %v757
        %v812 = vpop.permute.xlu0 %811
        %815 = vset.pattern.permute.xlu0 0
        %816 = vperm.xlu0 %815, %v758
        %v817 = vpop.permute.xlu0 %816
        %820 = vset.pattern.permute.xlu0 0
        %821 = vperm.xlu0 %820, %v759
        %v822 = vpop.permute.xlu0 %821
        %825 = vset.pattern.permute.xlu0 0
        %826 = vperm.xlu0 %825, %v760
        %v827 = vpop.permute.xlu0 %826
        %830 = vset.pattern.permute.xlu0 0
        %831 = vperm.xlu0 %830, %v761
        %v832 = vpop.permute.xlu0 %831
        %835 = vset.pattern.permute.xlu0 0
        %836 = vperm.xlu0 %835, %v762
        %v837 = vpop.permute.xlu0 %836
        %840 = vset.pattern.permute.xlu0 0
        %841 = vperm.xlu0 %840, %v763
        %v842 = vpop.permute.xlu0 %841
        %v844 = vadd.f32 %v732, %v767
        %v845 = vadd.f32 %v733, %v772
        %v846 = vadd.f32 %v734, %v777
        %v847 = vadd.f32 %v735, %v782
        %v848 = vadd.f32 %v736, %v787
        %v849 = vadd.f32 %v737, %v792
        %v850 = vadd.f32 %v738, %v797
        %v851 = vadd.f32 %v739, %v802
        %v852 = vadd.f32 %v740, %v807
        %v853 = vadd.f32 %v741, %v812
        %v854 = vadd.f32 %v742, %v817
        %v855 = vadd.f32 %v743, %v822
        %v856 = vadd.f32 %v744, %v827
        %v857 = vadd.f32 %v745, %v832
        %v858 = vadd.f32 %v746, %v837
        %v859 = vadd.f32 %v747, %v842
        %v860 = vxor.u32 %v844, 2147483648
        %v861 = vxor.u32 %v845, 2147483648
        %v862 = vxor.u32 %v846, 2147483648
        %v863 = vxor.u32 %v847, 2147483648
        %v864 = vxor.u32 %v848, 2147483648
        %v865 = vxor.u32 %v849, 2147483648
        %v866 = vxor.u32 %v850, 2147483648
        %v867 = vxor.u32 %v851, 2147483648
        %v868 = vxor.u32 %v852, 2147483648
        %v869 = vxor.u32 %v853, 2147483648
        %v870 = vxor.u32 %v854, 2147483648
        %v871 = vxor.u32 %v855, 2147483648
        %v872 = vxor.u32 %v856, 2147483648
        %v873 = vxor.u32 %v857, 2147483648
        %v874 = vxor.u32 %v858, 2147483648
        %v875 = vxor.u32 %v859, 2147483648
        %v876 = vmul.f32 %v860, 1.442695
        %v877 = vpow.pop %v876
        %v878 = vmul.f32 %v861, 1.442695
        %v879 = vpow.pop %v878
        %v880 = vmul.f32 %v862, 1.442695
        %v881 = vpow.pop %v880
        %v882 = vmul.f32 %v863, 1.442695
        %v883 = vpow.pop %v882
        %v884 = vmul.f32 %v864, 1.442695
        %v885 = vpow.pop %v884
        %v886 = vmul.f32 %v865, 1.442695
        %v887 = vpow.pop %v886
        %v888 = vmul.f32 %v866, 1.442695
        %v889 = vpow.pop %v888
        %v890 = vmul.f32 %v867, 1.442695
        %v891 = vpow.pop %v890
        %v892 = vmul.f32 %v868, 1.442695
        %v893 = vpow.pop %v892
        %v894 = vmul.f32 %v869, 1.442695
        %v895 = vpow.pop %v894
        %v896 = vmul.f32 %v870, 1.442695
        %v897 = vpow.pop %v896
        %v898 = vmul.f32 %v871, 1.442695
        %v899 = vpow.pop %v898
        %v900 = vmul.f32 %v872, 1.442695
        %v901 = vpow.pop %v900
        %v902 = vmul.f32 %v873, 1.442695
        %v903 = vpow.pop %v902
        %v904 = vmul.f32 %v874, 1.442695
        %v905 = vpow.pop %v904
        %v906 = vmul.f32 %v875, 1.442695
        %v907 = vpow.pop %v906
        %v908 = vadd.f32 %v877, 1.0
        %v909 = vadd.f32 %v879, 1.0
        %v910 = vadd.f32 %v881, 1.0
        %v911 = vadd.f32 %v883, 1.0
        %v912 = vadd.f32 %v885, 1.0
        %v913 = vadd.f32 %v887, 1.0
        %v914 = vadd.f32 %v889, 1.0
        %v915 = vadd.f32 %v891, 1.0
        %v916 = vadd.f32 %v893, 1.0
        %v917 = vadd.f32 %v895, 1.0
        %v918 = vadd.f32 %v897, 1.0
        %v919 = vadd.f32 %v899, 1.0
        %v920 = vadd.f32 %v901, 1.0
        %v921 = vadd.f32 %v903, 1.0
        %v922 = vadd.f32 %v905, 1.0
        %v923 = vadd.f32 %v907, 1.0
        %v924 = vrcp.pop %v908
        %v925 = vmul.f32 1.0, %v924
        %v926 = vrcp.pop %v909
        %v927 = vmul.f32 1.0, %v926
        %v928 = vrcp.pop %v910
        %v929 = vmul.f32 1.0, %v928
        %v930 = vrcp.pop %v911
        %v931 = vmul.f32 1.0, %v930
        %v932 = vrcp.pop %v912
        %v933 = vmul.f32 1.0, %v932
        %v934 = vrcp.pop %v913
        %v935 = vmul.f32 1.0, %v934
        %v936 = vrcp.pop %v914
        %v937 = vmul.f32 1.0, %v936
        %v938 = vrcp.pop %v915
        %v939 = vmul.f32 1.0, %v938
        %v940 = vrcp.pop %v916
        %v941 = vmul.f32 1.0, %v940
        %v942 = vrcp.pop %v917
        %v943 = vmul.f32 1.0, %v942
        %v944 = vrcp.pop %v918
        %v945 = vmul.f32 1.0, %v944
        %v946 = vrcp.pop %v919
        %v947 = vmul.f32 1.0, %v946
        %v948 = vrcp.pop %v920
        %v949 = vmul.f32 1.0, %v948
        %v950 = vrcp.pop %v921
        %v951 = vmul.f32 1.0, %v950
        %v952 = vrcp.pop %v922
        %v953 = vmul.f32 1.0, %v952
        %v954 = vrcp.pop %v923
        %v955 = vmul.f32 1.0, %v954
        %v956 = vmul.f32 %v844, %v925
        %v957 = vmul.f32 %v845, %v927
        %v958 = vmul.f32 %v846, %v929
        %v959 = vmul.f32 %v847, %v931
        %v960 = vmul.f32 %v848, %v933
        %v961 = vmul.f32 %v849, %v935
        %v962 = vmul.f32 %v850, %v937
        %v963 = vmul.f32 %v851, %v939
        %v964 = vmul.f32 %v852, %v941
        %v965 = vmul.f32 %v853, %v943
        %v966 = vmul.f32 %v854, %v945
        %v967 = vmul.f32 %v855, %v947
        %v968 = vmul.f32 %v856, %v949
        %v969 = vmul.f32 %v857, %v951
        %v970 = vmul.f32 %v858, %v953
        %v971 = vmul.f32 %v859, %v955
        %v972 = vld [vmem:[#allocation2] sm:$0xff]
        %v973 = vld [vmem:[#allocation2 + $0x8] sm:$0xff]
        %v974 = vld [vmem:[#allocation2 + $0x10] sm:$0xff]
        %v975 = vld [vmem:[#allocation2 + $0x18] sm:$0xff]
        %v976 = vld [vmem:[#allocation2 + $0x20] sm:$0xff]
        %v977 = vld [vmem:[#allocation2 + $0x28] sm:$0xff]
        %v978 = vld [vmem:[#allocation2 + $0x30] sm:$0xff]
        %v979 = vld [vmem:[#allocation2 + $0x38] sm:$0xff]
        %v980 = vld [vmem:[#allocation2 + $0x40] sm:$0xff]
        %v981 = vld [vmem:[#allocation2 + $0x48] sm:$0xff]
        %v982 = vld [vmem:[#allocation2 + $0x50] sm:$0xff]
        %v983 = vld [vmem:[#allocation2 + $0x58] sm:$0xff]
        %v984 = vld [vmem:[#allocation2 + $0x60] sm:$0xff]
        %v985 = vld [vmem:[#allocation2 + $0x68] sm:$0xff]
        %v986 = vld [vmem:[#allocation2 + $0x70] sm:$0xff]
        %v987 = vld [vmem:[#allocation2 + $0x78] sm:$0xff]
        %v988 = vadd.f32 %v972, %v956
        %v989 = vadd.f32 %v973, %v957
        %v990 = vadd.f32 %v974, %v958
        %v991 = vadd.f32 %v975, %v959
        %v992 = vadd.f32 %v976, %v960
        %v993 = vadd.f32 %v977, %v961
        %v994 = vadd.f32 %v978, %v962
        %v995 = vadd.f32 %v979, %v963
        %v996 = vadd.f32 %v980, %v964
        %v997 = vadd.f32 %v981, %v965
        %v998 = vadd.f32 %v982, %v966
        %v999 = vadd.f32 %v983, %v967
        %v1000 = vadd.f32 %v984, %v968
        %v1001 = vadd.f32 %v985, %v969
        %v1002 = vadd.f32 %v986, %v970
        %v1003 = vadd.f32 %v987, %v971
        %1004 = vst [vmem:[#allocation2] sm:$0xff] %v988
        %1005 = vst [vmem:[#allocation2 + $0x8] sm:$0xff] %v989
        %1006 = vst [vmem:[#allocation2 + $0x10] sm:$0xff] %v990
        %1007 = vst [vmem:[#allocation2 + $0x18] sm:$0xff] %v991
        %1008 = vst [vmem:[#allocation2 + $0x20] sm:$0xff] %v992
        %1009 = vst [vmem:[#allocation2 + $0x28] sm:$0xff] %v993
        %1010 = vst [vmem:[#allocation2 + $0x30] sm:$0xff] %v994
        %1011 = vst [vmem:[#allocation2 + $0x38] sm:$0xff] %v995
        %1012 = vst [vmem:[#allocation2 + $0x40] sm:$0xff] %v996
        %1013 = vst [vmem:[#allocation2 + $0x48] sm:$0xff] %v997
        %1014 = vst [vmem:[#allocation2 + $0x50] sm:$0xff] %v998
        %1015 = vst [vmem:[#allocation2 + $0x58] sm:$0xff] %v999
        %1016 = vst [vmem:[#allocation2 + $0x60] sm:$0xff] %v1000
        %1017 = vst [vmem:[#allocation2 + $0x68] sm:$0xff] %v1001
        %1018 = vst [vmem:[#allocation2 + $0x70] sm:$0xff] %v1002
        %1019 = vst [vmem:[#allocation2 + $0x78] sm:$0xff] %v1003
        %p1020 = scmp.eq.s32.totalorder %s29, 1
        // Predicated region
        $region65: #{tpu_custom_call.1} parent=39 // pred_check
          %p1021 = pneg %p1020
        $region66: #{tpu_custom_call.1} parent=39 // pred_check_branch
          %1023 = sbr.rel (%p1021) target = $region68
        $region67: #{tpu_custom_call.1} parent=39 // pred_region
          %v1024 = vld [vmem:[#allocation2] sm:$0xff]
          %v1025 = vld [vmem:[#allocation2 + $0x8] sm:$0xff]
          %v1026 = vld [vmem:[#allocation2 + $0x10] sm:$0xff]
          %v1027 = vld [vmem:[#allocation2 + $0x18] sm:$0xff]
          %v1028 = vld [vmem:[#allocation2 + $0x20] sm:$0xff]
          %v1029 = vld [vmem:[#allocation2 + $0x28] sm:$0xff]
          %v1030 = vld [vmem:[#allocation2 + $0x30] sm:$0xff]
          %v1031 = vld [vmem:[#allocation2 + $0x38] sm:$0xff]
          %v1032 = vld [vmem:[#allocation2 + $0x40] sm:$0xff]
          %v1033 = vld [vmem:[#allocation2 + $0x48] sm:$0xff]
          %v1034 = vld [vmem:[#allocation2 + $0x50] sm:$0xff]
          %v1035 = vld [vmem:[#allocation2 + $0x58] sm:$0xff]
          %v1036 = vld [vmem:[#allocation2 + $0x60] sm:$0xff]
          %v1037 = vld [vmem:[#allocation2 + $0x68] sm:$0xff]
          %v1038 = vld [vmem:[#allocation2 + $0x70] sm:$0xff]
          %v1039 = vld [vmem:[#allocation2 + $0x78] sm:$0xff]
          %1040 = vadd.xlane.f32.xlu0 %v1024
          %v1041 = vpop.xlane.xlu0 %1040
          %1042 = vadd.xlane.f32.xlu0 %v1025
          %v1043 = vpop.xlane.xlu0 %1042
          %1044 = vadd.xlane.f32.xlu0 %v1026
          %v1045 = vpop.xlane.xlu0 %1044
          %1046 = vadd.xlane.f32.xlu0 %v1027
          %v1047 = vpop.xlane.xlu0 %1046
          %1048 = vadd.xlane.f32.xlu0 %v1028
          %v1049 = vpop.xlane.xlu0 %1048
          %1050 = vadd.xlane.f32.xlu0 %v1029
          %v1051 = vpop.xlane.xlu0 %1050
          %1052 = vadd.xlane.f32.xlu0 %v1030
          %v1053 = vpop.xlane.xlu0 %1052
          %1054 = vadd.xlane.f32.xlu0 %v1031
          %v1055 = vpop.xlane.xlu0 %1054
          %1056 = vadd.xlane.f32.xlu0 %v1032
          %v1057 = vpop.xlane.xlu0 %1056
          %1058 = vadd.xlane.f32.xlu0 %v1033
          %v1059 = vpop.xlane.xlu0 %1058
          %1060 = vadd.xlane.f32.xlu0 %v1034
          %v1061 = vpop.xlane.xlu0 %1060
          %1062 = vadd.xlane.f32.xlu0 %v1035
          %v1063 = vpop.xlane.xlu0 %1062
          %1064 = vadd.xlane.f32.xlu0 %v1036
          %v1065 = vpop.xlane.xlu0 %1064
          %1066 = vadd.xlane.f32.xlu0 %v1037
          %v1067 = vpop.xlane.xlu0 %1066
          %1068 = vadd.xlane.f32.xlu0 %v1038
          %v1069 = vpop.xlane.xlu0 %1068
          %1070 = vadd.xlane.f32.xlu0 %v1039
          %v1071 = vpop.xlane.xlu0 %1070
          %v1072 = vmul.f32 %v1041, 0.00390625
          %v1073 = vmul.f32 %v1043, 0.00390625
          %v1074 = vmul.f32 %v1045, 0.00390625
          %v1075 = vmul.f32 %v1047, 0.00390625
          %v1076 = vmul.f32 %v1049, 0.00390625
          %v1077 = vmul.f32 %v1051, 0.00390625
          %v1078 = vmul.f32 %v1053, 0.00390625
          %v1079 = vmul.f32 %v1055, 0.00390625
          %v1080 = vmul.f32 %v1057, 0.00390625
          %v1081 = vmul.f32 %v1059, 0.00390625
          %v1082 = vmul.f32 %v1061, 0.00390625
          %v1083 = vmul.f32 %v1063, 0.00390625
          %v1084 = vmul.f32 %v1065, 0.00390625
          %v1085 = vmul.f32 %v1067, 0.00390625
          %v1086 = vmul.f32 %v1069, 0.00390625
          %v1087 = vmul.f32 %v1071, 0.00390625
          %v1088 = vld [vmem:[#allocation9] sm:$0xff]
          %v1089 = vld [vmem:[#allocation9 + $0x8] sm:$0xff]
          %v1090 = vld [vmem:[#allocation9 + $0x10] sm:$0xff]
          %v1091 = vld [vmem:[#allocation9 + $0x18] sm:$0xff]
          %v1092 = vld [vmem:[#allocation9 + $0x20] sm:$0xff]
          %v1093 = vld [vmem:[#allocation9 + $0x28] sm:$0xff]
          %v1094 = vld [vmem:[#allocation9 + $0x30] sm:$0xff]
          %v1095 = vld [vmem:[#allocation9 + $0x38] sm:$0xff]
          %v1096 = vld [vmem:[#allocation9 + $0x40] sm:$0xff]
          %v1097 = vld [vmem:[#allocation9 + $0x48] sm:$0xff]
          %v1098 = vld [vmem:[#allocation9 + $0x50] sm:$0xff]
          %v1099 = vld [vmem:[#allocation9 + $0x58] sm:$0xff]
          %v1100 = vld [vmem:[#allocation9 + $0x60] sm:$0xff]
          %v1101 = vld [vmem:[#allocation9 + $0x68] sm:$0xff]
          %v1102 = vld [vmem:[#allocation9 + $0x70] sm:$0xff]
          %v1103 = vld [vmem:[#allocation9 + $0x78] sm:$0xff]
          %v1104 = vmul.f32 %v1072, %v1088
          %v1105 = vmul.f32 %v1073, %v1089
          %v1106 = vmul.f32 %v1074, %v1090
          %v1107 = vmul.f32 %v1075, %v1091
          %v1108 = vmul.f32 %v1076, %v1092
          %v1109 = vmul.f32 %v1077, %v1093
          %v1110 = vmul.f32 %v1078, %v1094
          %v1111 = vmul.f32 %v1079, %v1095
          %v1112 = vmul.f32 %v1080, %v1096
          %v1113 = vmul.f32 %v1081, %v1097
          %v1114 = vmul.f32 %v1082, %v1098
          %v1115 = vmul.f32 %v1083, %v1099
          %v1116 = vmul.f32 %v1084, %v1100
          %v1117 = vmul.f32 %v1085, %v1101
          %v1118 = vmul.f32 %v1086, %v1102
          %v1119 = vmul.f32 %v1087, %v1103
          %v1120 = vadd.f32 %v1104, %v1105
          %v1121 = vadd.f32 %v1120, %v1106
          %v1122 = vadd.f32 %v1121, %v1107
          %v1123 = vadd.f32 %v1122, %v1108
          %v1124 = vadd.f32 %v1123, %v1109
          %v1125 = vadd.f32 %v1124, %v1110
          %v1126 = vadd.f32 %v1125, %v1111
          %v1127 = vadd.f32 %v1126, %v1112
          %v1128 = vadd.f32 %v1127, %v1113
          %v1129 = vadd.f32 %v1128, %v1114
          %v1130 = vadd.f32 %v1129, %v1115
          %v1131 = vadd.f32 %v1130, %v1116
          %v1132 = vadd.f32 %v1131, %v1117
          %v1133 = vadd.f32 %v1132, %v1118
          %v1134 = vadd.f32 %v1133, %v1119
          %v1135 = vrot.slane %v1134, 4
          %v1136 = vadd.f32 %v1134, %v1135
          %v1137 = vrot.slane %v1136, 2
          %v1138 = vadd.f32 %v1136, %v1137
          %v1139 = vrot.slane %v1138, 1
          %v1140 = vadd.f32 %v1138, %v1139
          %v1141 = vld [vmem:[#allocation11] sm:$0x1]
          %v1142 = vadd.f32 %v1140, %v1141
          %v1143 = vmax.f32 %v1142, 0.0
          %1144 = vst [vmem:[%s310] sm:$0x1] %v1143
        $region68: #{tpu_custom_call.1} parent=39 // pred_fallthru
          _
        %s1145 = sand.u32 %s156, 1
        %s1146 = scalar_lea.sflag [#allocation5], %s1145
        %s1147 = sand.u32 %s156, 1
        %s1148 = scalar_lea.vmem [#allocation12], %s1147
        // Predicated region
        $region69: #{tpu_custom_call.1} parent=39 // pred_check
          %p1149 = pneg %p166
        $region70: #{tpu_custom_call.1} parent=39 // pred_check_branch
          %1151 = sbr.rel (%p1149) target = $region72
        $region71: #{tpu_custom_call.1} parent=39 // pred_region
          %s1153 = ssub.s32 16, 16
          %1154 = vsyncadd %s1146, %s1153
          %s1155 = smul.addr %s28, 16
          %s1156 = scalar_lea.hbm %s5, %s1155
          %s1158 = sshll.u32 %s1148, 4
          %s1159 = int_to_ptr.vmem [resolvable:$true] %s1158
          %1161 = dma.vmem_to_hbm [thread:$0]  %s1159, 16, %s1156, %s1146
        $region72: #{tpu_custom_call.1} parent=39 // pred_fallthru
          _
      $region40: #{tpu_custom_call.1} parent=5 // pred_fallthru
        _
      %p1162 = scmp.le.s32.totalorder 2, %s19
      // Predicated region
      $region73: #{tpu_custom_call.1} parent=5 // pred_check
        %p1163 = pneg %p1162
      $region74: #{tpu_custom_call.1} parent=5 // pred_check_branch
        %1165 = sbr.rel (%p1163) target = $region76
      $region75: #{tpu_custom_call.1} parent=5 // pred_region
        %s1166 = ssub.s32 %s19, 2
        // Predicated region
        $region77: #{tpu_custom_call.1} parent=75 // pred_check
          %p1167 = pneg %p172
        $region78: #{tpu_custom_call.1} parent=75 // pred_check_branch
          %1169 = sbr.rel (%p1167) target = $region80
        $region79: #{tpu_custom_call.1} parent=75 // pred_region
          %s1170 = sand.u32 %s157, 1
          %s1171 = scalar_lea.sflag [#allocation5], %s1170
          %s1172 = sand.u32 %s157, 1
          %s1173 = scalar_lea.vmem [#allocation12], %s1172
          %1174 = dma.done %s1171, 16
        $region80: #{tpu_custom_call.1} parent=75 // pred_fallthru
          _
      $region76: #{tpu_custom_call.1} parent=5 // pred_fallthru
        _
    $region6: #{tpu_custom_call.1} parent=1 // loop_footer
      %s23 = sadd.s32 1, %s19
    $region7: #{tpu_custom_call.1} parent=1 // loop_footer_branch
      %18 = sbr.rel target = $region3
    $region8: #{tpu_custom_call.1} parent=1 // loop_exit
      _
    %1175 = vsyncpa [#allocation4], 1
    %s1176 = scalar_lea.sflag [#allocation4], 1
    %1177 = vsyncpa %s1176, 1
    %1178 = vsyncpa [#allocation7], 1
    %1179 = vsyncpa [#allocation10], 1
    %1180 = vsyncpa [#allocation5], 1
    %s1181 = scalar_lea.sflag [#allocation5], 1
    %1182 = vsyncpa %s1181, 1

</llo_original>
